<compile_context>
chip_gen: v6e
topology: v6e:2x2x1
jax: 0.10.0
libtpu: 0.0.40
codegen_flags: <defaults>
</compile_context>

<pallas_src>
import functools
import math

import jax
import jax.numpy as jnp
from jax import lax
from jax.experimental import pallas as pl
from jax.experimental.pallas import tpu as pltpu


def _mha_kernel(q_ref, k_ref, v_ref,
                wq_ref, bq_ref, wk_ref, bk_ref, wv_ref, bv_ref,
                wo_ref, bo_ref,
                o_ref,
                acc_ref,
                *, head_dim):
    """One (batch element, head) step.

    Block shapes seen by the kernel:
      q/k/v_ref : (1, S, D)        (resident across the head axis)
      wq/wk/wv  : (D, Dh)          (this head's slice, streamed per step)
      bq/bk/bv  : (1, Dh)
      wo_ref    : (Dh, D)          (this head's rows of the out-projection)
      bo_ref    : (1, D)
      o_ref     : (1, S, D)        (same block for every head -> accumulator)
      acc_ref   : (S, D) f32 VMEM scratch
    """
    h = pl.program_id(1)

    @pl.when(h == 0)
    def _init():
        acc_ref[...] = jnp.zeros_like(acc_ref)

    x_q = q_ref[0]                      # (S, D), input dtype (f32 or bf16)
    x_k = k_ref[0]
    x_v = v_ref[0]
    in_dtype = x_q.dtype

    # --- per-head in-projections (weights pre-sliced by BlockSpec) ---
    qh = jnp.dot(x_q, wq_ref[...], preferred_element_type=jnp.float32) + bq_ref[...]
    kh = jnp.dot(x_k, wk_ref[...], preferred_element_type=jnp.float32) + bk_ref[...]
    vh = jnp.dot(x_v, wv_ref[...], preferred_element_type=jnp.float32) + bv_ref[...]

    # Fold 1/sqrt(Dh) into qh: S*Dh multiplies instead of S*S.
    scale = jnp.float32(1.0 / math.sqrt(head_dim))
    qh = (qh * scale).astype(in_dtype)
    kh = kh.astype(in_dtype)
    vh = vh.astype(in_dtype)

    # --- scores: contract last axis of both operands (no kh.T transpose) ---
    scores = lax.dot_general(
        qh, kh, (((1,), (1,)), ((), ())),
        preferred_element_type=jnp.float32)              # (S, S) f32

    # --- numerically stable softmax; reciprocal goes to the EUP slot ---
    scores = scores - jnp.max(scores, axis=-1, keepdims=True)
    p = jnp.exp(scores)
    denom = jnp.sum(p, axis=-1, keepdims=True)
    p = p * pl.reciprocal(denom, approx=True)

    # --- attention output for this head ---
    attn = jnp.dot(p.astype(in_dtype), vh,
                   preferred_element_type=jnp.float32)   # (S, Dh) f32

    # --- this head's contribution to the out-projection ---
    # concat_h(attn_h) @ Wo  ==  sum_h  attn_h @ Wo[h*Dh:(h+1)*Dh, :]
    acc_ref[...] += jnp.dot(attn.astype(in_dtype), wo_ref[...],
                            preferred_element_type=jnp.float32)

    @pl.when(h == pl.num_programs(1) - 1)
    def _finalize():
        o_ref[0] = (acc_ref[...] + bo_ref[...]).astype(o_ref.dtype)


def multihead_attention(q, k, v, params, *, num_heads):
    """q, k, v: (B, S, D) arrays.  params: dict of (in, out)-layout weights."""
    B, S, D = q.shape
    assert D % num_heads == 0, "embed_dim must be divisible by num_heads"
    head_dim = D // num_heads
    # Per-head weight blocks have last dim == head_dim; keep it lane-aligned.
    assert head_dim % 128 == 0 or num_heads == 1, (
        "this kernel streams per-head weight tiles; head_dim must be a "
        "multiple of 128 (or num_heads == 1)")

    dt = q.dtype  # matmuls run in the input dtype (bf16 recommended) w/ f32 acc
    wq, bq = params["wq"].astype(dt), params["bq"]
    wk, bk = params["wk"].astype(dt), params["bk"]
    wv, bv = params["wv"].astype(dt), params["bv"]
    wo, bo = params["wo"].astype(dt), params["bo"]

    kernel = functools.partial(_mha_kernel, head_dim=head_dim)

    seq_spec = pl.BlockSpec((1, S, D), lambda b, h: (b, 0, 0))
    w_in_spec = pl.BlockSpec((D, head_dim), lambda b, h: (0, h))   # column slice
    b_in_spec = pl.BlockSpec((1, head_dim), lambda b, h: (0, h))
    w_out_spec = pl.BlockSpec((head_dim, D), lambda b, h: (h, 0))  # row slice
    b_out_spec = pl.BlockSpec((1, D), lambda b, h: (0, 0))

    out = pl.pallas_call(
        kernel,
        out_shape=jax.ShapeDtypeStruct((B, S, D), q.dtype),
        grid_spec=pltpu.PrefetchScalarGridSpec(
            num_scalar_prefetch=0,
            grid=(B, num_heads),                # head axis innermost (reduction)
            in_specs=[
                seq_spec, seq_spec, seq_spec,   # q, k, v (resident across heads)
                w_in_spec, b_in_spec,           # wq, bq   (streamed per head)
                w_in_spec, b_in_spec,           # wk, bk
                w_in_spec, b_in_spec,           # wv, bv
                w_out_spec, b_out_spec,         # wo, bo
            ],
            out_specs=seq_spec,                 # same block across heads -> acc
            scratch_shapes=[pltpu.VMEM((S, D), jnp.float32)],
        ),
        compiler_params=pltpu.CompilerParams(
            dimension_semantics=("parallel", "arbitrary")),
    )(q, k, v, wq, bq, wk, bk, wv, bv, wo, bo)
    return out


def _xavier_uniform(key, fan_in, fan_out, dtype=jnp.float32):
    bound = math.sqrt(6.0 / (fan_in + fan_out))
    return jax.random.uniform(key, (fan_in, fan_out), dtype, -bound, bound)


def init_params(key, embed_dim, dtype=jnp.float32):
    """Matches the module's init protocol: xavier_uniform weights, zero biases
    (split_qkv=True, bias=True).  Weights stored as (in, out)."""
    kq, kk, kv, ko = jax.random.split(key, 4)
    D = embed_dim
    zeros = jnp.zeros((1, D), dtype)
    return {
        "wq": _xavier_uniform(kq, D, D, dtype), "bq": zeros,
        "wk": _xavier_uniform(kk, D, D, dtype), "bk": zeros,
        "wv": _xavier_uniform(kv, D, D, dtype), "bv": zeros,
        "wo": _xavier_uniform(ko, D, D, dtype), "bo": zeros,
    }


def _reference(q, k, v, params, *, num_heads):
    """Plain-JAX reference mirroring the PyTorch forward (dropout = 0)."""
    B, S, D = q.shape
    Dh = D // num_heads

    qp = q @ params["wq"] + params["bq"]
    kp = k @ params["wk"] + params["bk"]
    vp = v @ params["wv"] + params["bv"]

    def split_heads(x):
        return x.reshape(B, S, num_heads, Dh).transpose(0, 2, 1, 3)  # (B,H,S,Dh)

    qh, kh, vh = split_heads(qp), split_heads(kp), split_heads(vp)
    scores = jnp.einsum("bhqd,bhkd->bhqk", qh, kh) / jnp.sqrt(jnp.float32(Dh))
    p = jax.nn.softmax(scores, axis=-1)
    out = jnp.einsum("bhqk,bhkd->bhqd", p, vh)
    out = out.transpose(0, 2, 1, 3).reshape(B, S, D)
    return out @ params["wo"] + params["bo"]


if __name__ == "__main__":
    # Small but tile-aligned shapes: head_dim = 128 so every block's last dim
    # is a 128-multiple (lane-dense stores, per-head weight streaming works).
    B, S, D, H = 2, 16, 256, 2

    key = jax.random.PRNGKey(0)
    kp, kq_in, kk_in, kv_in = jax.random.split(key, 4)

    params = init_params(kp, D)
    q = jax.random.normal(kq_in, (B, S, D), jnp.float32)
    k = jax.random.normal(kk_in, (B, S, D), jnp.float32)
    v = jax.random.normal(kv_in, (B, S, D), jnp.float32)

    out = multihead_attention(q, k, v, params, num_heads=H)
    out = jax.block_until_ready(out)

    ref = _reference(q, k, v, params, num_heads=H)
    assert out.shape == (B, S, D)
    # Tolerance is loosened slightly because the softmax denominator uses the
    # EUP approximate reciprocal (pl.reciprocal(approx=True)).
    assert jnp.allclose(out, ref, rtol=1e-2, atol=1e-2), "mismatch vs reference"

    print("KERNEL_OK")
</pallas_src>

<mosaic_0001>
module attributes {stable_mosaic.version = 11 : i64} {
  func.func @_mha_kernel(%arg0: i32, %arg1: i32, %arg2: memref<1x16x256xf32, #tpu.memory_space<vmem>>, %arg3: memref<1x16x256xf32, #tpu.memory_space<vmem>>, %arg4: memref<1x16x256xf32, #tpu.memory_space<vmem>>, %arg5: memref<256x128xf32, #tpu.memory_space<vmem>>, %arg6: memref<1x128xf32, #tpu.memory_space<vmem>>, %arg7: memref<256x128xf32, #tpu.memory_space<vmem>>, %arg8: memref<1x128xf32, #tpu.memory_space<vmem>>, %arg9: memref<256x128xf32, #tpu.memory_space<vmem>>, %arg10: memref<1x128xf32, #tpu.memory_space<vmem>>, %arg11: memref<128x256xf32, #tpu.memory_space<vmem>>, %arg12: memref<1x256xf32, #tpu.memory_space<vmem>>, %arg13: memref<1x16x256xf32, #tpu.memory_space<vmem>>, %arg14: memref<16x256xf32, #tpu.memory_space<vmem>>) attributes {dimension_semantics = [#tpu.dimension_semantics<parallel>, #tpu.dimension_semantics<arbitrary>], iteration_bounds = array<i64: 2, 2>, scalar_prefetch = 0 : i64, scratch_operands = 1 : i64, tpu.core_type = #tpu.core_type<tc>, window_params = [{transform_indices = @transform_0, window_bounds = array<i64: 1, 16, 256>}, {transform_indices = @transform_1, window_bounds = array<i64: 1, 16, 256>}, {transform_indices = @transform_2, window_bounds = array<i64: 1, 16, 256>}, {transform_indices = @transform_3, window_bounds = array<i64: 256, 128>}, {transform_indices = @transform_4, window_bounds = array<i64: 1, 128>}, {transform_indices = @transform_5, window_bounds = array<i64: 256, 128>}, {transform_indices = @transform_6, window_bounds = array<i64: 1, 128>}, {transform_indices = @transform_7, window_bounds = array<i64: 256, 128>}, {transform_indices = @transform_8, window_bounds = array<i64: 1, 128>}, {transform_indices = @transform_9, window_bounds = array<i64: 128, 256>}, {pipeline_mode = #tpu.pipeline_mode<synchronous>, transform_indices = @transform_10, window_bounds = array<i64: 1, 256>}, {transform_indices = @transform_11, window_bounds = array<i64: 1, 16, 256>}]} {
    %c0_i32 = arith.constant 0 : i32
    %0 = arith.cmpi eq, %arg1, %c0_i32 : i32
    %1 = arith.extui %0 : i1 to i32
    %c0_i32_0 = arith.constant 0 : i32
    %2 = arith.cmpi ne, %1, %c0_i32_0 : i32
    scf.if %2 {
      %cst_36 = arith.constant 0.000000e+00 : f32
      %46 = vector.broadcast %cst_36 : f32 to vector<16x256xf32>
      %c0_37 = arith.constant 0 : index
      %c0_38 = arith.constant 0 : index
      %47 = vector.load %arg14[%c0_37, %c0_38] : memref<16x256xf32, #tpu.memory_space<vmem>>, vector<16x256xf32>
      tpu.vector_store %arg14[%c0_37, %c0_38], %46 {strides = array<i32>} : memref<16x256xf32, #tpu.memory_space<vmem>>, vector<16x256xf32>,
    } else {
    }
    %c0 = arith.constant 0 : index
    %c0_1 = arith.constant 0 : index
    %c0_2 = arith.constant 0 : index
    %3 = vector.load %arg2[%c0, %c0_1, %c0_2] : memref<1x16x256xf32, #tpu.memory_space<vmem>>, vector<1x16x256xf32>
    %4 = vector.shape_cast %3 : vector<1x16x256xf32> to vector<16x256xf32>
    %c0_3 = arith.constant 0 : index
    %c0_4 = arith.constant 0 : index
    %c0_5 = arith.constant 0 : index
    %5 = vector.load %arg3[%c0_3, %c0_4, %c0_5] : memref<1x16x256xf32, #tpu.memory_space<vmem>>, vector<1x16x256xf32>
    %6 = vector.shape_cast %5 : vector<1x16x256xf32> to vector<16x256xf32>
    %c0_6 = arith.constant 0 : index
    %c0_7 = arith.constant 0 : index
    %c0_8 = arith.constant 0 : index
    %7 = vector.load %arg4[%c0_6, %c0_7, %c0_8] : memref<1x16x256xf32, #tpu.memory_space<vmem>>, vector<1x16x256xf32>
    %8 = vector.shape_cast %7 : vector<1x16x256xf32> to vector<16x256xf32>
    %c0_9 = arith.constant 0 : index
    %c0_10 = arith.constant 0 : index
    %9 = vector.load %arg5[%c0_9, %c0_10] : memref<256x128xf32, #tpu.memory_space<vmem>>, vector<256x128xf32>
    %cst = arith.constant dense<0.000000e+00> : vector<16x128xf32>
    %10 = tpu.matmul %4, %9, %cst {dimension_numbers = #tpu.dot_dimension_numbers<[1], [0], [0], [1], [0, 0, 1, 1], [], []>} : vector<16x256xf32>, vector<256x128xf32>, vector<16x128xf32> -> vector<16x128xf32>
    %c0_11 = arith.constant 0 : index
    %c0_12 = arith.constant 0 : index
    %11 = vector.load %arg6[%c0_11, %c0_12] : memref<1x128xf32, #tpu.memory_space<vmem>>, vector<1x128xf32>
    %12 = vector.broadcast %11 : vector<1x128xf32> to vector<16x128xf32>
    %13 = arith.addf %10, %12 : vector<16x128xf32>
    %c0_13 = arith.constant 0 : index
    %c0_14 = arith.constant 0 : index
    %14 = vector.load %arg7[%c0_13, %c0_14] : memref<256x128xf32, #tpu.memory_space<vmem>>, vector<256x128xf32>
    %cst_15 = arith.constant dense<0.000000e+00> : vector<16x128xf32>
    %15 = tpu.matmul %6, %14, %cst_15 {dimension_numbers = #tpu.dot_dimension_numbers<[1], [0], [0], [1], [0, 0, 1, 1], [], []>} : vector<16x256xf32>, vector<256x128xf32>, vector<16x128xf32> -> vector<16x128xf32>
    %c0_16 = arith.constant 0 : index
    %c0_17 = arith.constant 0 : index
    %16 = vector.load %arg8[%c0_16, %c0_17] : memref<1x128xf32, #tpu.memory_space<vmem>>, vector<1x128xf32>
    %17 = vector.broadcast %16 : vector<1x128xf32> to vector<16x128xf32>
    %18 = arith.addf %15, %17 : vector<16x128xf32>
    %c0_18 = arith.constant 0 : index
    %c0_19 = arith.constant 0 : index
    %19 = vector.load %arg9[%c0_18, %c0_19] : memref<256x128xf32, #tpu.memory_space<vmem>>, vector<256x128xf32>
    %cst_20 = arith.constant dense<0.000000e+00> : vector<16x128xf32>
    %20 = tpu.matmul %8, %19, %cst_20 {dimension_numbers = #tpu.dot_dimension_numbers<[1], [0], [0], [1], [0, 0, 1, 1], [], []>} : vector<16x256xf32>, vector<256x128xf32>, vector<16x128xf32> -> vector<16x128xf32>
    %c0_21 = arith.constant 0 : index
    %c0_22 = arith.constant 0 : index
    %21 = vector.load %arg10[%c0_21, %c0_22] : memref<1x128xf32, #tpu.memory_space<vmem>>, vector<1x128xf32>
    %22 = vector.broadcast %21 : vector<1x128xf32> to vector<16x128xf32>
    %23 = arith.addf %20, %22 : vector<16x128xf32>
    %cst_23 = arith.constant 0.0883883461 : f32
    %24 = vector.broadcast %cst_23 : f32 to vector<16x128xf32>
    %25 = arith.mulf %13, %24 : vector<16x128xf32>
    %cst_24 = arith.constant dense<0.000000e+00> : vector<16x16xf32>
    %26 = tpu.matmul %25, %18, %cst_24 {dimension_numbers = #tpu.dot_dimension_numbers<[1], [1], [0], [0], [0, 0, 1, 0], [], []>} : vector<16x128xf32>, vector<16x128xf32>, vector<16x16xf32> -> vector<16x16xf32>
    %cst_25 = arith.constant dense<0xFF800000> : vector<16xf32>
    %27 = vector.multi_reduction <maximumf>, %26, %cst_25 [1] : vector<16x16xf32> to vector<16xf32>
    %28 = vector.shape_cast %27 : vector<16xf32> to vector<16x1xf32>
    %29 = vector.broadcast %28 : vector<16x1xf32> to vector<16x16xf32>
    %30 = arith.subf %26, %29 : vector<16x16xf32>
    %31 = math.exp %30 : vector<16x16xf32>
    %cst_26 = arith.constant dense<0.000000e+00> : vector<16xf32>
    %32 = vector.multi_reduction <add>, %31, %cst_26 [1] : vector<16x16xf32> to vector<16xf32>
    %33 = vector.shape_cast %32 : vector<16xf32> to vector<16x1xf32>
    %34 = tpu.reciprocal %33 {approx = true} : vector<16x1xf32> -> vector<16x1xf32>
    %35 = vector.broadcast %34 : vector<16x1xf32> to vector<16x16xf32>
    %36 = arith.mulf %31, %35 : vector<16x16xf32>
    %cst_27 = arith.constant dense<0.000000e+00> : vector<16x128xf32>
    %37 = tpu.matmul %36, %23, %cst_27 {dimension_numbers = #tpu.dot_dimension_numbers<[1], [0], [0], [1], [0, 0, 1, 1], [], []>} : vector<16x16xf32>, vector<16x128xf32>, vector<16x128xf32> -> vector<16x128xf32>
    %c0_28 = arith.constant 0 : index
    %c0_29 = arith.constant 0 : index
    %38 = vector.load %arg14[%c0_28, %c0_29] : memref<16x256xf32, #tpu.memory_space<vmem>>, vector<16x256xf32>
    %c0_30 = arith.constant 0 : index
    %c0_31 = arith.constant 0 : index
    %39 = vector.load %arg11[%c0_30, %c0_31] : memref<128x256xf32, #tpu.memory_space<vmem>>, vector<128x256xf32>
    %cst_32 = arith.constant dense<0.000000e+00> : vector<16x256xf32>
    %40 = tpu.matmul %37, %39, %cst_32 {dimension_numbers = #tpu.dot_dimension_numbers<[1], [0], [0], [1], [0, 0, 1, 1], [], []>} : vector<16x128xf32>, vector<128x256xf32>, vector<16x256xf32> -> vector<16x256xf32>
    %41 = arith.addf %38, %40 : vector<16x256xf32>
    %c0_33 = arith.constant 0 : index
    %c0_34 = arith.constant 0 : index
    %42 = vector.load %arg14[%c0_33, %c0_34] : memref<16x256xf32, #tpu.memory_space<vmem>>, vector<16x256xf32>
    tpu.vector_store %arg14[%c0_33, %c0_34], %41 {strides = array<i32>} : memref<16x256xf32, #tpu.memory_space<vmem>>, vector<16x256xf32>,
    %c1_i32 = arith.constant 1 : i32
    %43 = arith.cmpi eq, %arg1, %c1_i32 : i32
    %44 = arith.extui %43 : i1 to i32
    %c0_i32_35 = arith.constant 0 : i32
    %45 = arith.cmpi ne, %44, %c0_i32_35 : i32
    scf.if %45 {
      %c0_36 = arith.constant 0 : index
      %c0_37 = arith.constant 0 : index
      %46 = vector.load %arg14[%c0_36, %c0_37] : memref<16x256xf32, #tpu.memory_space<vmem>>, vector<16x256xf32>
      %c0_38 = arith.constant 0 : index
      %c0_39 = arith.constant 0 : index
      %47 = vector.load %arg12[%c0_38, %c0_39] : memref<1x256xf32, #tpu.memory_space<vmem>>, vector<1x256xf32>
      %48 = vector.broadcast %47 : vector<1x256xf32> to vector<16x256xf32>
      %49 = arith.addf %46, %48 : vector<16x256xf32>
      %c0_40 = arith.constant 0 : index
      %c0_41 = arith.constant 0 : index
      %c0_42 = arith.constant 0 : index
      %50 = vector.load %arg13[%c0_40, %c0_41, %c0_42] : memref<1x16x256xf32, #tpu.memory_space<vmem>>, vector<1x16x256xf32>
      %51 = vector.shape_cast %50 : vector<1x16x256xf32> to vector<16x256xf32>
      %52 = vector.shape_cast %49 : vector<16x256xf32> to vector<1x16x256xf32>
      tpu.vector_store %arg13[%c0_40, %c0_41, %c0_42], %52 {strides = array<i32>} : memref<1x16x256xf32, #tpu.memory_space<vmem>>, vector<1x16x256xf32>,
    } else {
    }
    return
  }
  func.func @transform_0(%arg0: i32, %arg1: i32) -> (i32, i32, i32) {
    %c0_i32 = arith.constant 0 : i32
    %c0_i32_0 = arith.constant 0 : i32
    %c0_i32_1 = arith.constant 0 : i32
    return %arg0, %c0_i32, %c0_i32_0 : i32, i32, i32
  }
  func.func @transform_1(%arg0: i32, %arg1: i32) -> (i32, i32, i32) {
    %c0_i32 = arith.constant 0 : i32
    %c0_i32_0 = arith.constant 0 : i32
    %c0_i32_1 = arith.constant 0 : i32
    return %arg0, %c0_i32, %c0_i32_0 : i32, i32, i32
  }
  func.func @transform_2(%arg0: i32, %arg1: i32) -> (i32, i32, i32) {
    %c0_i32 = arith.constant 0 : i32
    %c0_i32_0 = arith.constant 0 : i32
    %c0_i32_1 = arith.constant 0 : i32
    return %arg0, %c0_i32, %c0_i32_0 : i32, i32, i32
  }
  func.func @transform_3(%arg0: i32, %arg1: i32) -> (i32, i32) {
    %c0_i32 = arith.constant 0 : i32
    %c0_i32_0 = arith.constant 0 : i32
    return %c0_i32, %arg1 : i32, i32
  }
  func.func @transform_4(%arg0: i32, %arg1: i32) -> (i32, i32) {
    %c0_i32 = arith.constant 0 : i32
    %c0_i32_0 = arith.constant 0 : i32
    return %c0_i32, %arg1 : i32, i32
  }
  func.func @transform_5(%arg0: i32, %arg1: i32) -> (i32, i32) {
    %c0_i32 = arith.constant 0 : i32
    %c0_i32_0 = arith.constant 0 : i32
    return %c0_i32, %arg1 : i32, i32
  }
  func.func @transform_6(%arg0: i32, %arg1: i32) -> (i32, i32) {
    %c0_i32 = arith.constant 0 : i32
    %c0_i32_0 = arith.constant 0 : i32
    return %c0_i32, %arg1 : i32, i32
  }
  func.func @transform_7(%arg0: i32, %arg1: i32) -> (i32, i32) {
    %c0_i32 = arith.constant 0 : i32
    %c0_i32_0 = arith.constant 0 : i32
    return %c0_i32, %arg1 : i32, i32
  }
  func.func @transform_8(%arg0: i32, %arg1: i32) -> (i32, i32) {
    %c0_i32 = arith.constant 0 : i32
    %c0_i32_0 = arith.constant 0 : i32
    return %c0_i32, %arg1 : i32, i32
  }
  func.func @transform_9(%arg0: i32, %arg1: i32) -> (i32, i32) {
    %c0_i32 = arith.constant 0 : i32
    %c0_i32_0 = arith.constant 0 : i32
    return %arg1, %c0_i32 : i32, i32
  }
  func.func @transform_10(%arg0: i32, %arg1: i32) -> (i32, i32) {
    %c0_i32 = arith.constant 0 : i32
    %c0_i32_0 = arith.constant 0 : i32
    %c0_i32_1 = arith.constant 0 : i32
    return %c0_i32, %c0_i32_0 : i32, i32
  }
  func.func @transform_11(%arg0: i32, %arg1: i32) -> (i32, i32, i32) {
    %c0_i32 = arith.constant 0 : i32
    %c0_i32_0 = arith.constant 0 : i32
    %c0_i32_1 = arith.constant 0 : i32
    return %arg0, %c0_i32, %c0_i32_0 : i32, i32, i32
  }
}

</mosaic_0001>

<llo_original>
// kernel: tpu_custom_call.1
$region0: #{tpu_custom_call.1}
  #allocation0 [shape = 'u32[]', space=smem, size = 0x4, offset = 0x4, fixed_abs, tag = 'smem constant byte address 0x4 - core index']
  #allocation1 [shape = 'u32[144,128]{1,0:T(1,128)}', space=vmem, size = 0x12000, scoped, tag = 'internal scratch']
  #allocation2 [shape = 'f32[16,256]{1,0:T(8,128)}', space=vmem, size = 0x4000, scoped, tag = 'scratch operand']
  %s0 = inlined_call_operand.hbm [shape: f32[2,16,256], index: 0, kind: input, shape index: {}]
  %s1 = inlined_call_operand.hbm [shape: f32[2,16,256], index: 1, kind: input, shape index: {}]
  %s2 = inlined_call_operand.hbm [shape: f32[2,16,256], index: 2, kind: input, shape index: {}]
  %s3 = inlined_call_operand.hbm [shape: f32[256,256], index: 3, kind: input, shape index: {}]
  %s4 = inlined_call_operand.vmem [shape: f32[1,256], index: 4, kind: input, shape index: {}]
  %s5 = inlined_call_operand.hbm [shape: f32[256,256], index: 5, kind: input, shape index: {}]
  %s6 = inlined_call_operand.vmem [shape: f32[1,256], index: 6, kind: input, shape index: {}]
  %s7 = inlined_call_operand.hbm [shape: f32[256,256], index: 7, kind: input, shape index: {}]
  %s8 = inlined_call_operand.vmem [shape: f32[1,256], index: 8, kind: input, shape index: {}]
  %s9 = inlined_call_operand.hbm [shape: f32[256,256], index: 9, kind: input, shape index: {}]
  %s10 = inlined_call_operand.vmem [shape: f32[1,256], index: 10, kind: input, shape index: {}]
  %s11 = inlined_call_operand.hbm [shape: f32[2,16,256], index: 11, kind: output, shape index: {}]
  %s12 = sld [smem:[#allocation0]]
  $region113: #{tpu_custom_call.1} parent=0
    _
  %s14 = ssub.s32 1, %s12
  %s15 = scalar_select 0, %s14, %s12
  $region1: #{tpu_custom_call.1} parent=0
    #allocation3 [shape = 'u8[32768]{0}', space=vmem, size = 0x8000, scoped, tag = 'input window, operand 0']
    #allocation4 [shape = 's32[2]{0}', space=sflag, size = 0x8, scoped, tag = 'scoped memory for tpu_custom_call.1']
    #allocation5 [shape = 's32[2]{0}', space=sflag, size = 0x8, scoped, tag = 'scoped memory for tpu_custom_call.1']
    #allocation6 [shape = 'u8[32768]{0}', space=vmem, size = 0x8000, scoped, tag = 'input window, operand 1']
    #allocation7 [shape = 's32[2]{0}', space=sflag, size = 0x8, scoped, tag = 'scoped memory for tpu_custom_call.1']
    #allocation8 [shape = 'u8[32768]{0}', space=vmem, size = 0x8000, scoped, tag = 'input window, operand 2']
    #allocation9 [shape = 'u8[262144]{0}', space=vmem, size = 0x40000, scoped, tag = 'input window, operand 3']
    #allocation10 [shape = 's32[2]{0}', space=sflag, size = 0x8, scoped, tag = 'scoped memory for tpu_custom_call.1']
    #allocation11 [shape = 'u8[262144]{0}', space=vmem, size = 0x40000, scoped, tag = 'input window, operand 5']
    #allocation12 [shape = 'u8[262144]{0}', space=vmem, size = 0x40000, scoped, tag = 'input window, operand 7']
    #allocation13 [shape = 's32[2]{0}', space=sflag, size = 0x8, scoped, tag = 'scoped memory for tpu_custom_call.1']
    #allocation14 [shape = 'u8[262144]{0}', space=vmem, size = 0x40000, scoped, tag = 'input window, operand 9']
    #allocation15 [shape = 'u8[32768]{0}', space=vmem, size = 0x8000, scoped, tag = 'output window, operand 0']
    %16 = vsyncpa [#allocation4], 0
    %s17 = scalar_lea.sflag [#allocation4], 1
    %18 = vsyncpa %s17, 0
    %19 = vsyncpa [#allocation7], 0
    %s20 = scalar_lea.sflag [#allocation7], 1
    %21 = vsyncpa %s20, 0
    %22 = vsyncpa [#allocation10], 0
    %s23 = scalar_lea.sflag [#allocation10], 1
    %24 = vsyncpa %s23, 0
    %25 = vsyncpa [#allocation13], 0
    %s26 = scalar_lea.sflag [#allocation13], 1
    %27 = vsyncpa %s26, 0
    %28 = vsyncpa [#allocation5], 0
    %s29 = scalar_lea.sflag [#allocation5], 1
    %30 = vsyncpa %s29, 0
    loop: start=0, step=1, limit=6
    $region2: #{tpu_custom_call.1} parent=1 // loop_pre_header
      _
    $region3: #{tpu_custom_call.1} parent=1 // loop_header
      %s32 = sphi 0, %s36
      %p33 = scmp.ge.s32.totalorder %s32, 6
      %s39 = sphi 0, %s51
      %s40 = sphi 0, %s47
      %s41 = sphi 0, %s39
      %s42 = sphi 0, %s40
      %s43 = sphi 0, %s41
      %s44 = sphi 0, %s42
      %s54 = sphi 0, %s56
      %s57 = sphi 0, %s54
      %s58 = sphi 0, %s57
      %s74 = sphi 0, %s58
      %s80 = sphi 0, %s82
      %s83 = sphi 0, %s80
      %s84 = sphi 0, %s83
      %s100 = sphi 0, %s84
      %s106 = sphi 0, %s108
      %s109 = sphi 0, %s106
      %s110 = sphi 0, %s109
      %s126 = sphi 0, %s110
      %s132 = sphi 0, %s134
      %s135 = sphi 0, %s132
      %s136 = sphi 0, %s135
      %s152 = sphi 0, %s136
      %s158 = sphi 0, %s160
      %s161 = sphi 0, %s158
      %s162 = sphi 0, %s161
      %s178 = sphi 0, %s162
      %s184 = sphi 0, %s186
      %s187 = sphi 0, %s184
      %s188 = sphi 0, %s187
      %s204 = sphi 0, %s188
      %s210 = sphi 0, %s212
      %s213 = sphi 0, %s210
      %s214 = sphi 0, %s213
      %s230 = sphi 0, %s214
      %s236 = sphi 0, %s238
      %s239 = sphi 0, %s236
      %s240 = sphi 0, %s239
      %s256 = sphi 0, %s240
      %s262 = sphi 0, %s264
      %s265 = sphi 0, %s262
      %s266 = sphi 0, %s265
      %s282 = sphi 0, %s266
      %s288 = sphi 0, %s290
      %s291 = sphi 0, %s288
      %s292 = sphi 0, %s291
      %s308 = sphi 0, %s292
      %s312 = sphi 0, %s312
      %s314 = sphi 0, %s312
      %s315 = sphi 0, %s314
      %s329 = sphi 0, %s315
      %s335 = sphi 0, %s337
      %s338 = sphi 0, %s335
      %s339 = sphi 0, %s338
      %s355 = sphi 0, %s339
    $region4: #{tpu_custom_call.1} parent=1 // loop_header_branch
      %35 = sbr.rel (%p33) target = $region8
    $region5: #{tpu_custom_call.1} parent=1 // loop_body
      %s37 = ssub.s32 %s32, 1
      %s38 = ssub.s32 %s32, 2
      %s45 = sadd.s32 1, %s40
      %p46 = scmp.ge.s32.totalorder %s45, 2
      %s47 = scalar_select %p46, 0, %s45
      %s48 = sadd.s32 1, %s39
      %s49 = scalar_select %p46, %s48, %s39
      %p50 = scmp.ge.s32.totalorder %s49, 2
      %s51 = scalar_select %p50, 0, %s49
      %s52 = ssub.s32 %s39, %s51
      %p53 = scmp.eq.s32.totalorder %s52, 0
      %s55 = sadd.s32 %s54, 1
      %s56 = scalar_select %p53, %s54, %s55
      %p59 = pneg %p53
      %p60 = scmp.eq.s32.totalorder %s32, 3
      %p61 = por %p59, %p60
      %p62 = scmp.ne.s32.totalorder %s54, %s57
      %p63 = scmp.eq.s32.totalorder %s32, 0
      %p64 = por %p62, %p63
      %p65 = scmp.ne.s32.totalorder %s54, %s57
      %p66 = scmp.eq.s32.totalorder %s37, 3
      %p67 = por %p65, %p66
      %p68 = scmp.ne.s32.totalorder %s57, %s58
      %p69 = scmp.eq.s32.totalorder %s37, 0
      %p70 = por %p68, %p69
      %p71 = scmp.ne.s32.totalorder %s57, %s58
      %p72 = scmp.eq.s32.totalorder %s38, 3
      %p73 = por %p71, %p72
      %p75 = scmp.ne.s32.totalorder %s58, %s74
      %p76 = scmp.eq.s32.totalorder %s38, 0
      %p77 = por %p75, %p76
      %s78 = ssub.s32 %s39, %s51
      %p79 = scmp.eq.s32.totalorder %s78, 0
      %s81 = sadd.s32 %s80, 1
      %s82 = scalar_select %p79, %s80, %s81
      %p85 = pneg %p79
      %p86 = scmp.eq.s32.totalorder %s32, 3
      %p87 = por %p85, %p86
      %p88 = scmp.ne.s32.totalorder %s80, %s83
      %p89 = scmp.eq.s32.totalorder %s32, 0
      %p90 = por %p88, %p89
      %p91 = scmp.ne.s32.totalorder %s80, %s83
      %p92 = scmp.eq.s32.totalorder %s37, 3
      %p93 = por %p91, %p92
      %p94 = scmp.ne.s32.totalorder %s83, %s84
      %p95 = scmp.eq.s32.totalorder %s37, 0
      %p96 = por %p94, %p95
      %p97 = scmp.ne.s32.totalorder %s83, %s84
      %p98 = scmp.eq.s32.totalorder %s38, 3
      %p99 = por %p97, %p98
      %p101 = scmp.ne.s32.totalorder %s84, %s100
      %p102 = scmp.eq.s32.totalorder %s38, 0
      %p103 = por %p101, %p102
      %s104 = ssub.s32 %s39, %s51
      %p105 = scmp.eq.s32.totalorder %s104, 0
      %s107 = sadd.s32 %s106, 1
      %s108 = scalar_select %p105, %s106, %s107
      %p111 = pneg %p105
      %p112 = scmp.eq.s32.totalorder %s32, 3
      %p113 = por %p111, %p112
      %p114 = scmp.ne.s32.totalorder %s106, %s109
      %p115 = scmp.eq.s32.totalorder %s32, 0
      %p116 = por %p114, %p115
      %p117 = scmp.ne.s32.totalorder %s106, %s109
      %p118 = scmp.eq.s32.totalorder %s37, 3
      %p119 = por %p117, %p118
      %p120 = scmp.ne.s32.totalorder %s109, %s110
      %p121 = scmp.eq.s32.totalorder %s37, 0
      %p122 = por %p120, %p121
      %p123 = scmp.ne.s32.totalorder %s109, %s110
      %p124 = scmp.eq.s32.totalorder %s38, 3
      %p125 = por %p123, %p124
      %p127 = scmp.ne.s32.totalorder %s110, %s126
      %p128 = scmp.eq.s32.totalorder %s38, 0
      %p129 = por %p127, %p128
      %s130 = ssub.s32 %s40, %s47
      %p131 = scmp.eq.s32.totalorder %s130, 0
      %s133 = sadd.s32 %s132, 1
      %s134 = scalar_select %p131, %s132, %s133
      %p137 = pneg %p131
      %p138 = scmp.eq.s32.totalorder %s32, 3
      %p139 = por %p137, %p138
      %p140 = scmp.ne.s32.totalorder %s132, %s135
      %p141 = scmp.eq.s32.totalorder %s32, 0
      %p142 = por %p140, %p141
      %p143 = scmp.ne.s32.totalorder %s132, %s135
      %p144 = scmp.eq.s32.totalorder %s37, 3
      %p145 = por %p143, %p144
      %p146 = scmp.ne.s32.totalorder %s135, %s136
      %p147 = scmp.eq.s32.totalorder %s37, 0
      %p148 = por %p146, %p147
      %p149 = scmp.ne.s32.totalorder %s135, %s136
      %p150 = scmp.eq.s32.totalorder %s38, 3
      %p151 = por %p149, %p150
      %p153 = scmp.ne.s32.totalorder %s136, %s152
      %p154 = scmp.eq.s32.totalorder %s38, 0
      %p155 = por %p153, %p154
      %s156 = ssub.s32 %s40, %s47
      %p157 = scmp.eq.s32.totalorder %s156, 0
      %s159 = sadd.s32 %s158, 1
      %s160 = scalar_select %p157, %s158, %s159
      %p163 = pneg %p157
      %p164 = scmp.eq.s32.totalorder %s32, 3
      %p165 = por %p163, %p164
      %p166 = scmp.ne.s32.totalorder %s158, %s161
      %p167 = scmp.eq.s32.totalorder %s32, 0
      %p168 = por %p166, %p167
      %p169 = scmp.ne.s32.totalorder %s158, %s161
      %p170 = scmp.eq.s32.totalorder %s37, 3
      %p171 = por %p169, %p170
      %p172 = scmp.ne.s32.totalorder %s161, %s162
      %p173 = scmp.eq.s32.totalorder %s37, 0
      %p174 = por %p172, %p173
      %p175 = scmp.ne.s32.totalorder %s161, %s162
      %p176 = scmp.eq.s32.totalorder %s38, 3
      %p177 = por %p175, %p176
      %p179 = scmp.ne.s32.totalorder %s162, %s178
      %p180 = scmp.eq.s32.totalorder %s38, 0
      %p181 = por %p179, %p180
      %s182 = ssub.s32 %s40, %s47
      %p183 = scmp.eq.s32.totalorder %s182, 0
      %s185 = sadd.s32 %s184, 1
      %s186 = scalar_select %p183, %s184, %s185
      %p189 = pneg %p183
      %p190 = scmp.eq.s32.totalorder %s32, 3
      %p191 = por %p189, %p190
      %p192 = scmp.ne.s32.totalorder %s184, %s187
      %p193 = scmp.eq.s32.totalorder %s32, 0
      %p194 = por %p192, %p193
      %p195 = scmp.ne.s32.totalorder %s184, %s187
      %p196 = scmp.eq.s32.totalorder %s37, 3
      %p197 = por %p195, %p196
      %p198 = scmp.ne.s32.totalorder %s187, %s188
      %p199 = scmp.eq.s32.totalorder %s37, 0
      %p200 = por %p198, %p199
      %p201 = scmp.ne.s32.totalorder %s187, %s188
      %p202 = scmp.eq.s32.totalorder %s38, 3
      %p203 = por %p201, %p202
      %p205 = scmp.ne.s32.totalorder %s188, %s204
      %p206 = scmp.eq.s32.totalorder %s38, 0
      %p207 = por %p205, %p206
      %s208 = ssub.s32 %s40, %s47
      %p209 = scmp.eq.s32.totalorder %s208, 0
      %s211 = sadd.s32 %s210, 1
      %s212 = scalar_select %p209, %s210, %s211
      %p215 = pneg %p209
      %p216 = scmp.eq.s32.totalorder %s32, 3
      %p217 = por %p215, %p216
      %p218 = scmp.ne.s32.totalorder %s210, %s213
      %p219 = scmp.eq.s32.totalorder %s32, 0
      %p220 = por %p218, %p219
      %p221 = scmp.ne.s32.totalorder %s210, %s213
      %p222 = scmp.eq.s32.totalorder %s37, 3
      %p223 = por %p221, %p222
      %p224 = scmp.ne.s32.totalorder %s213, %s214
      %p225 = scmp.eq.s32.totalorder %s37, 0
      %p226 = por %p224, %p225
      %p227 = scmp.ne.s32.totalorder %s213, %s214
      %p228 = scmp.eq.s32.totalorder %s38, 3
      %p229 = por %p227, %p228
      %p231 = scmp.ne.s32.totalorder %s214, %s230
      %p232 = scmp.eq.s32.totalorder %s38, 0
      %p233 = por %p231, %p232
      %s234 = ssub.s32 %s40, %s47
      %p235 = scmp.eq.s32.totalorder %s234, 0
      %s237 = sadd.s32 %s236, 1
      %s238 = scalar_select %p235, %s236, %s237
      %p241 = pneg %p235
      %p242 = scmp.eq.s32.totalorder %s32, 3
      %p243 = por %p241, %p242
      %p244 = scmp.ne.s32.totalorder %s236, %s239
      %p245 = scmp.eq.s32.totalorder %s32, 0
      %p246 = por %p244, %p245
      %p247 = scmp.ne.s32.totalorder %s236, %s239
      %p248 = scmp.eq.s32.totalorder %s37, 3
      %p249 = por %p247, %p248
      %p250 = scmp.ne.s32.totalorder %s239, %s240
      %p251 = scmp.eq.s32.totalorder %s37, 0
      %p252 = por %p250, %p251
      %p253 = scmp.ne.s32.totalorder %s239, %s240
      %p254 = scmp.eq.s32.totalorder %s38, 3
      %p255 = por %p253, %p254
      %p257 = scmp.ne.s32.totalorder %s240, %s256
      %p258 = scmp.eq.s32.totalorder %s38, 0
      %p259 = por %p257, %p258
      %s260 = ssub.s32 %s40, %s47
      %p261 = scmp.eq.s32.totalorder %s260, 0
      %s263 = sadd.s32 %s262, 1
      %s264 = scalar_select %p261, %s262, %s263
      %p267 = pneg %p261
      %p268 = scmp.eq.s32.totalorder %s32, 3
      %p269 = por %p267, %p268
      %p270 = scmp.ne.s32.totalorder %s262, %s265
      %p271 = scmp.eq.s32.totalorder %s32, 0
      %p272 = por %p270, %p271
      %p273 = scmp.ne.s32.totalorder %s262, %s265
      %p274 = scmp.eq.s32.totalorder %s37, 3
      %p275 = por %p273, %p274
      %p276 = scmp.ne.s32.totalorder %s265, %s266
      %p277 = scmp.eq.s32.totalorder %s37, 0
      %p278 = por %p276, %p277
      %p279 = scmp.ne.s32.totalorder %s265, %s266
      %p280 = scmp.eq.s32.totalorder %s38, 3
      %p281 = por %p279, %p280
      %p283 = scmp.ne.s32.totalorder %s266, %s282
      %p284 = scmp.eq.s32.totalorder %s38, 0
      %p285 = por %p283, %p284
      %s286 = ssub.s32 %s40, %s47
      %p287 = scmp.eq.s32.totalorder %s286, 0
      %s289 = sadd.s32 %s288, 1
      %s290 = scalar_select %p287, %s288, %s289
      %p293 = pneg %p287
      %p294 = scmp.eq.s32.totalorder %s32, 3
      %p295 = por %p293, %p294
      %p296 = scmp.ne.s32.totalorder %s288, %s291
      %p297 = scmp.eq.s32.totalorder %s32, 0
      %p298 = por %p296, %p297
      %p299 = scmp.ne.s32.totalorder %s288, %s291
      %p300 = scmp.eq.s32.totalorder %s37, 3
      %p301 = por %p299, %p300
      %p302 = scmp.ne.s32.totalorder %s291, %s292
      %p303 = scmp.eq.s32.totalorder %s37, 0
      %p304 = por %p302, %p303
      %p305 = scmp.ne.s32.totalorder %s291, %s292
      %p306 = scmp.eq.s32.totalorder %s38, 3
      %p307 = por %p305, %p306
      %p309 = scmp.ne.s32.totalorder %s292, %s308
      %p310 = scmp.eq.s32.totalorder %s38, 0
      %p311 = por %p309, %p310
      %s313 = sadd.s32 %s312, 1
      %p316 = scmp.eq.s32.totalorder %s32, 3
      %p317 = scmp.ne.s32.totalorder %s312, %s314
      %p318 = scmp.eq.s32.totalorder %s32, 0
      %p319 = por %p317, %p318
      %p320 = scmp.ne.s32.totalorder %s312, %s314
      %p321 = scmp.eq.s32.totalorder %s37, 3
      %p322 = por %p320, %p321
      %p323 = scmp.ne.s32.totalorder %s314, %s315
      %p324 = scmp.eq.s32.totalorder %s37, 0
      %p325 = por %p323, %p324
      %p326 = scmp.ne.s32.totalorder %s314, %s315
      %p327 = scmp.eq.s32.totalorder %s38, 3
      %p328 = por %p326, %p327
      %p330 = scmp.ne.s32.totalorder %s315, %s329
      %p331 = scmp.eq.s32.totalorder %s38, 0
      %p332 = por %p330, %p331
      %s333 = ssub.s32 %s39, %s51
      %p334 = scmp.eq.s32.totalorder %s333, 0
      %s336 = sadd.s32 %s335, 1
      %s337 = scalar_select %p334, %s335, %s336
      %p340 = pneg %p334
      %p341 = scmp.eq.s32.totalorder %s32, 3
      %p342 = por %p340, %p341
      %p343 = scmp.ne.s32.totalorder %s335, %s338
      %p344 = scmp.eq.s32.totalorder %s32, 0
      %p345 = por %p343, %p344
      %p346 = scmp.ne.s32.totalorder %s335, %s338
      %p347 = scmp.eq.s32.totalorder %s37, 3
      %p348 = por %p346, %p347
      %p349 = scmp.ne.s32.totalorder %s338, %s339
      %p350 = scmp.eq.s32.totalorder %s37, 0
      %p351 = por %p349, %p350
      %p352 = scmp.ne.s32.totalorder %s338, %s339
      %p353 = scmp.eq.s32.totalorder %s38, 3
      %p354 = por %p352, %p353
      %p356 = scmp.ne.s32.totalorder %s339, %s355
      %p357 = scmp.eq.s32.totalorder %s38, 0
      %p358 = por %p356, %p357
      %p359 = scmp.le.s32.totalorder 1, %s32
      %p360 = scmp.lt.s32.totalorder %s32, 5
      %p361 = pnand %p359, %p360
      %p362 = pneg %p361
      // Predicated region
      $region9: #{tpu_custom_call.1} parent=5 // pred_check
        _
      $region10: #{tpu_custom_call.1} parent=5 // pred_check_branch
        %364 = sbr.rel (%p361) target = $region12
      $region11: #{tpu_custom_call.1} parent=5 // pred_region
        %s365 = ssub.s32 %s32, 1
        // Predicated region
        $region13: #{tpu_custom_call.1} parent=11 // pred_check
          %p366 = pneg %p325
        $region14: #{tpu_custom_call.1} parent=11 // pred_check_branch
          %368 = sbr.rel (%p366) target = $region16
        $region15: #{tpu_custom_call.1} parent=11 // pred_region
          _
        $region16: #{tpu_custom_call.1} parent=11 // pred_fallthru
          _
      $region12: #{tpu_custom_call.1} parent=5 // pred_fallthru
        _
      %p369 = scmp.lt.s32.totalorder %s32, 4
      // Predicated region
      $region17: #{tpu_custom_call.1} parent=5 // pred_check
        %p370 = pneg %p369
      $region18: #{tpu_custom_call.1} parent=5 // pred_check_branch
        %372 = sbr.rel (%p370) target = $region20
      $region19: #{tpu_custom_call.1} parent=5 // pred_region
        // Predicated region
        $region21: #{tpu_custom_call.1} parent=19 // pred_check
          %p373 = pneg %p64
        $region22: #{tpu_custom_call.1} parent=19 // pred_check_branch
          %375 = sbr.rel (%p373) target = $region24
        $region23: #{tpu_custom_call.1} parent=19 // pred_region
          %s376 = sand.u32 %s54, 1
          %s377 = scalar_lea.sflag [#allocation4], %s376
          %s378 = sand.u32 %s54, 1
          %s379 = smul.addr %s378, 32
          %s380 = scalar_lea.vmem [#allocation3], %s379
          %s382 = ssub.s32 512, 512
          %383 = vsyncadd %s377, %s382
          %s384 = smul.addr %s39, 4
          %s385 = smul.addr %s384, 128
          %s386 = scalar_lea.hbm %s0, %s385
          %s387 = sshll.u32 %s380, 4
          %s388 = int_to_ptr.vmem [resolvable:$true] %s387
          %393 = dma.hbm_to_vmem [thread:$0]  %s386, 512, %s388, %s377, 256, 256, 16
        $region24: #{tpu_custom_call.1} parent=19 // pred_fallthru
          _
        // Predicated region
        $region25: #{tpu_custom_call.1} parent=19 // pred_check
          %p394 = pneg %p90
        $region26: #{tpu_custom_call.1} parent=19 // pred_check_branch
          %396 = sbr.rel (%p394) target = $region28
        $region27: #{tpu_custom_call.1} parent=19 // pred_region
          %s397 = sand.u32 %s32, 1
          %s398 = scalar_lea.sflag [#allocation7], %s397
          %s399 = sand.u32 %s80, 1
          %s400 = smul.addr %s399, 32
          %s401 = scalar_lea.vmem [#allocation6], %s400
          %s403 = ssub.s32 512, 512
          %404 = vsyncadd %s398, %s403
          %s405 = smul.addr %s39, 4
          %s406 = smul.addr %s405, 128
          %s407 = scalar_lea.hbm %s1, %s406
          %s408 = sshll.u32 %s401, 4
          %s409 = int_to_ptr.vmem [resolvable:$true] %s408
          %414 = dma.hbm_to_vmem [thread:$0]  %s407, 512, %s409, %s398, 256, 256, 16
        $region28: #{tpu_custom_call.1} parent=19 // pred_fallthru
          _
        // Predicated region
        $region29: #{tpu_custom_call.1} parent=19 // pred_check
          %p415 = pneg %p116
        $region30: #{tpu_custom_call.1} parent=19 // pred_check_branch
          %417 = sbr.rel (%p415) target = $region32
        $region31: #{tpu_custom_call.1} parent=19 // pred_region
          %s418 = sand.u32 %s32, 1
          %s419 = scalar_lea.sflag [#allocation7], %s418
          %s420 = sand.u32 %s106, 1
          %s421 = smul.addr %s420, 32
          %s422 = scalar_lea.vmem [#allocation8], %s421
          %s424 = ssub.s32 512, 512
          %425 = vsyncadd %s419, %s424
          %s426 = smul.addr %s39, 4
          %s427 = smul.addr %s426, 128
          %s428 = scalar_lea.hbm %s2, %s427
          %s429 = sshll.u32 %s422, 4
          %s430 = int_to_ptr.vmem [resolvable:$true] %s429
          %435 = dma.hbm_to_vmem [thread:$0]  %s428, 512, %s430, %s419, 256, 256, 16
        $region32: #{tpu_custom_call.1} parent=19 // pred_fallthru
          _
        // Predicated region
        $region33: #{tpu_custom_call.1} parent=19 // pred_check
          %p436 = pneg %p142
        $region34: #{tpu_custom_call.1} parent=19 // pred_check_branch
          %438 = sbr.rel (%p436) target = $region36
        $region35: #{tpu_custom_call.1} parent=19 // pred_region
          %s439 = sand.u32 %s32, 1
          %s440 = scalar_lea.sflag [#allocation10], %s439
          %s441 = sand.u32 %s132, 1
          %s442 = smul.addr %s441, 256
          %s443 = scalar_lea.vmem [#allocation9], %s442
          %s445 = ssub.s32 4096, 4096
          %446 = vsyncadd %s440, %s445
          %s447 = smul.addr %s40, 128
          %s448 = scalar_lea.hbm %s3, %s447
          %s449 = sshll.u32 %s443, 4
          %s450 = int_to_ptr.vmem [resolvable:$true] %s449
          %455 = dma.hbm_to_vmem [thread:$0]  %s448, 4096, %s450, %s440, 256, 128, 8
        $region36: #{tpu_custom_call.1} parent=19 // pred_fallthru
          _
        // Predicated region
        $region37: #{tpu_custom_call.1} parent=19 // pred_check
          %p456 = pneg %p168
        $region38: #{tpu_custom_call.1} parent=19 // pred_check_branch
          %458 = sbr.rel (%p456) target = $region40
        $region39: #{tpu_custom_call.1} parent=19 // pred_region
          %p459 = scmp.lt.s32.totalorder %s40, 1
          %s460 = scalar_select %p459, %s40, 1
          %s461 = scalar_lea.vmem %s4, %s460
        $region40: #{tpu_custom_call.1} parent=19 // pred_fallthru
          _
        // Predicated region
        $region41: #{tpu_custom_call.1} parent=19 // pred_check
          %p462 = pneg %p194
        $region42: #{tpu_custom_call.1} parent=19 // pred_check_branch
          %464 = sbr.rel (%p462) target = $region44
        $region43: #{tpu_custom_call.1} parent=19 // pred_region
          %s465 = sand.u32 %s32, 1
          %s466 = scalar_lea.sflag [#allocation10], %s465
          %s467 = sand.u32 %s184, 1
          %s468 = smul.addr %s467, 256
          %s469 = scalar_lea.vmem [#allocation11], %s468
          %s471 = ssub.s32 4096, 4096
          %472 = vsyncadd %s466, %s471
          %s473 = smul.addr %s40, 128
          %s474 = scalar_lea.hbm %s5, %s473
          %s475 = sshll.u32 %s469, 4
          %s476 = int_to_ptr.vmem [resolvable:$true] %s475
          %481 = dma.hbm_to_vmem [thread:$0]  %s474, 4096, %s476, %s466, 256, 128, 8
        $region44: #{tpu_custom_call.1} parent=19 // pred_fallthru
          _
        // Predicated region
        $region45: #{tpu_custom_call.1} parent=19 // pred_check
          %p482 = pneg %p220
        $region46: #{tpu_custom_call.1} parent=19 // pred_check_branch
          %484 = sbr.rel (%p482) target = $region48
        $region47: #{tpu_custom_call.1} parent=19 // pred_region
          %p485 = scmp.lt.s32.totalorder %s40, 1
          %s486 = scalar_select %p485, %s40, 1
          %s487 = scalar_lea.vmem %s6, %s486
        $region48: #{tpu_custom_call.1} parent=19 // pred_fallthru
          _
        // Predicated region
        $region49: #{tpu_custom_call.1} parent=19 // pred_check
          %p488 = pneg %p246
        $region50: #{tpu_custom_call.1} parent=19 // pred_check_branch
          %490 = sbr.rel (%p488) target = $region52
        $region51: #{tpu_custom_call.1} parent=19 // pred_region
          %s491 = sand.u32 %s32, 1
          %s492 = scalar_lea.sflag [#allocation13], %s491
          %s493 = sand.u32 %s236, 1
          %s494 = smul.addr %s493, 256
          %s495 = scalar_lea.vmem [#allocation12], %s494
          %s497 = ssub.s32 4096, 4096
          %498 = vsyncadd %s492, %s497
          %s499 = smul.addr %s40, 128
          %s500 = scalar_lea.hbm %s7, %s499
          %s501 = sshll.u32 %s495, 4
          %s502 = int_to_ptr.vmem [resolvable:$true] %s501
          %507 = dma.hbm_to_vmem [thread:$0]  %s500, 4096, %s502, %s492, 256, 128, 8
        $region52: #{tpu_custom_call.1} parent=19 // pred_fallthru
          _
        // Predicated region
        $region53: #{tpu_custom_call.1} parent=19 // pred_check
          %p508 = pneg %p272
        $region54: #{tpu_custom_call.1} parent=19 // pred_check_branch
          %510 = sbr.rel (%p508) target = $region56
        $region55: #{tpu_custom_call.1} parent=19 // pred_region
          %p511 = scmp.lt.s32.totalorder %s40, 1
          %s512 = scalar_select %p511, %s40, 1
          %s513 = scalar_lea.vmem %s8, %s512
        $region56: #{tpu_custom_call.1} parent=19 // pred_fallthru
          _
        // Predicated region
        $region57: #{tpu_custom_call.1} parent=19 // pred_check
          %p514 = pneg %p298
        $region58: #{tpu_custom_call.1} parent=19 // pred_check_branch
          %516 = sbr.rel (%p514) target = $region60
        $region59: #{tpu_custom_call.1} parent=19 // pred_region
          %s517 = sand.u32 %s32, 1
          %s518 = scalar_lea.sflag [#allocation13], %s517
          %s519 = sand.u32 %s288, 1
          %s520 = smul.addr %s519, 256
          %s521 = scalar_lea.vmem [#allocation14], %s520
          %s522 = smul.u32 16, %s40
          %s524 = ssub.s32 4096, 4096
          %525 = vsyncadd %s518, %s524
          %s526 = smul.addr %s522, 2
          %s527 = smul.addr %s526, 128
          %s528 = scalar_lea.hbm %s9, %s527
          %s529 = sshll.u32 %s521, 4
          %s530 = int_to_ptr.vmem [resolvable:$true] %s529
          %535 = dma.hbm_to_vmem [thread:$0]  %s528, 4096, %s530, %s518, 256, 256, 16
        $region60: #{tpu_custom_call.1} parent=19 // pred_fallthru
          _
      $region20: #{tpu_custom_call.1} parent=5 // pred_fallthru
        _
      %p536 = scmp.le.s32.totalorder 1, %s32
      %p537 = scmp.lt.s32.totalorder %s32, 5
      %p538 = pnand %p536, %p537
      %p539 = pneg %p538
      // Predicated region
      $region61: #{tpu_custom_call.1} parent=5 // pred_check
        _
      $region62: #{tpu_custom_call.1} parent=5 // pred_check_branch
        %541 = sbr.rel (%p538) target = $region64
      $region63: #{tpu_custom_call.1} parent=5 // pred_region
        %s542 = ssub.s32 %s32, 1
        %s543 = sand.u32 %s57, 1
        %s544 = scalar_lea.sflag [#allocation4], %s543
        %s545 = sand.u32 %s57, 1
        %s546 = smul.addr %s545, 32
        %s547 = scalar_lea.vmem [#allocation3], %s546
        // Predicated region
        $region65: #{tpu_custom_call.1} parent=63 // pred_check
          %p548 = pneg %p70
        $region66: #{tpu_custom_call.1} parent=63 // pred_check_branch
          %550 = sbr.rel (%p548) target = $region68
        $region67: #{tpu_custom_call.1} parent=63 // pred_region
          %551 = dma.done %s544, 512
        $region68: #{tpu_custom_call.1} parent=63 // pred_fallthru
          _
        %s552 = sand.u32 %s37, 1
        %s553 = scalar_lea.sflag [#allocation7], %s552
        %s554 = sand.u32 %s83, 1
        %s555 = smul.addr %s554, 32
        %s556 = scalar_lea.vmem [#allocation6], %s555
        // Predicated region
        $region69: #{tpu_custom_call.1} parent=63 // pred_check
          %p557 = pneg %p96
        $region70: #{tpu_custom_call.1} parent=63 // pred_check_branch
          %559 = sbr.rel (%p557) target = $region72
        $region71: #{tpu_custom_call.1} parent=63 // pred_region
          %560 = dma.done %s553, 512
        $region72: #{tpu_custom_call.1} parent=63 // pred_fallthru
          _
        %s561 = sand.u32 %s37, 1
        %s562 = scalar_lea.sflag [#allocation7], %s561
        %s563 = sand.u32 %s109, 1
        %s564 = smul.addr %s563, 32
        %s565 = scalar_lea.vmem [#allocation8], %s564
        // Predicated region
        $region73: #{tpu_custom_call.1} parent=63 // pred_check
          %p566 = pneg %p122
        $region74: #{tpu_custom_call.1} parent=63 // pred_check_branch
          %568 = sbr.rel (%p566) target = $region76
        $region75: #{tpu_custom_call.1} parent=63 // pred_region
          %569 = dma.done %s562, 512
        $region76: #{tpu_custom_call.1} parent=63 // pred_fallthru
          _
        %s570 = sand.u32 %s37, 1
        %s571 = scalar_lea.sflag [#allocation10], %s570
        %s572 = sand.u32 %s135, 1
        %s573 = smul.addr %s572, 256
        %s574 = scalar_lea.vmem [#allocation9], %s573
        // Predicated region
        $region77: #{tpu_custom_call.1} parent=63 // pred_check
          %p575 = pneg %p148
        $region78: #{tpu_custom_call.1} parent=63 // pred_check_branch
          %577 = sbr.rel (%p575) target = $region80
        $region79: #{tpu_custom_call.1} parent=63 // pred_region
          %578 = dma.done %s571, 4096
        $region80: #{tpu_custom_call.1} parent=63 // pred_fallthru
          _
        %s579 = sand.u32 %s37, 1
        %s580 = scalar_lea.sflag [#allocation10], %s579
        %s581 = sand.u32 %s187, 1
        %s582 = smul.addr %s581, 256
        %s583 = scalar_lea.vmem [#allocation11], %s582
        // Predicated region
        $region81: #{tpu_custom_call.1} parent=63 // pred_check
          %p584 = pneg %p200
        $region82: #{tpu_custom_call.1} parent=63 // pred_check_branch
          %586 = sbr.rel (%p584) target = $region84
        $region83: #{tpu_custom_call.1} parent=63 // pred_region
          %587 = dma.done %s580, 4096
        $region84: #{tpu_custom_call.1} parent=63 // pred_fallthru
          _
        %s588 = sand.u32 %s37, 1
        %s589 = scalar_lea.sflag [#allocation13], %s588
        %s590 = sand.u32 %s239, 1
        %s591 = smul.addr %s590, 256
        %s592 = scalar_lea.vmem [#allocation12], %s591
        // Predicated region
        $region85: #{tpu_custom_call.1} parent=63 // pred_check
          %p593 = pneg %p252
        $region86: #{tpu_custom_call.1} parent=63 // pred_check_branch
          %595 = sbr.rel (%p593) target = $region88
        $region87: #{tpu_custom_call.1} parent=63 // pred_region
          %596 = dma.done %s589, 4096
        $region88: #{tpu_custom_call.1} parent=63 // pred_fallthru
          _
        %s597 = sand.u32 %s37, 1
        %s598 = scalar_lea.sflag [#allocation13], %s597
        %s599 = sand.u32 %s291, 1
        %s600 = smul.addr %s599, 256
        %s601 = scalar_lea.vmem [#allocation14], %s600
        // Predicated region
        $region89: #{tpu_custom_call.1} parent=63 // pred_check
          %p602 = pneg %p304
        $region90: #{tpu_custom_call.1} parent=63 // pred_check_branch
          %604 = sbr.rel (%p602) target = $region92
        $region91: #{tpu_custom_call.1} parent=63 // pred_region
          %605 = dma.done %s598, 4096
        $region92: #{tpu_custom_call.1} parent=63 // pred_fallthru
          _
        %s606 = sand.u32 %s57, 1
        %s607 = scalar_lea.sflag [#allocation4], %s606
        %s608 = sand.u32 %s57, 1
        %s609 = smul.addr %s608, 32
        %s610 = scalar_lea.vmem [#allocation3], %s609
        %p611 = pneg %p70
        %p612 = pneg %p67
        %s613 = sand.u32 %s37, 1
        %s614 = scalar_lea.sflag [#allocation7], %s613
        %s615 = sand.u32 %s83, 1
        %s616 = smul.addr %s615, 32
        %s617 = scalar_lea.vmem [#allocation6], %s616
        %p618 = pneg %p96
        %p619 = pneg %p93
        %s620 = sand.u32 %s37, 1
        %s621 = scalar_lea.sflag [#allocation7], %s620
        %s622 = sand.u32 %s109, 1
        %s623 = smul.addr %s622, 32
        %s624 = scalar_lea.vmem [#allocation8], %s623
        %p625 = pneg %p122
        %p626 = pneg %p119
        %s627 = sand.u32 %s37, 1
        %s628 = scalar_lea.sflag [#allocation10], %s627
        %s629 = sand.u32 %s135, 1
        %s630 = smul.addr %s629, 256
        %s631 = scalar_lea.vmem [#allocation9], %s630
        %p632 = pneg %p148
        %p633 = pneg %p145
        %p634 = scmp.lt.s32.totalorder %s42, 1
        %s635 = scalar_select %p634, %s42, 1
        %s636 = scalar_lea.vmem %s4, %s635
        %p637 = pneg %p174
        %p638 = pneg %p171
        %s639 = sand.u32 %s37, 1
        %s640 = scalar_lea.sflag [#allocation10], %s639
        %s641 = sand.u32 %s187, 1
        %s642 = smul.addr %s641, 256
        %s643 = scalar_lea.vmem [#allocation11], %s642
        %p644 = pneg %p200
        %p645 = pneg %p197
        %p646 = scmp.lt.s32.totalorder %s42, 1
        %s647 = scalar_select %p646, %s42, 1
        %s648 = scalar_lea.vmem %s6, %s647
        %p649 = pneg %p226
        %p650 = pneg %p223
        %s651 = sand.u32 %s37, 1
        %s652 = scalar_lea.sflag [#allocation13], %s651
        %s653 = sand.u32 %s239, 1
        %s654 = smul.addr %s653, 256
        %s655 = scalar_lea.vmem [#allocation12], %s654
        %p656 = pneg %p252
        %p657 = pneg %p249
        %p658 = scmp.lt.s32.totalorder %s42, 1
        %s659 = scalar_select %p658, %s42, 1
        %s660 = scalar_lea.vmem %s8, %s659
        %p661 = pneg %p278
        %p662 = pneg %p275
        %s663 = sand.u32 %s37, 1
        %s664 = scalar_lea.sflag [#allocation13], %s663
        %s665 = sand.u32 %s291, 1
        %s666 = smul.addr %s665, 256
        %s667 = scalar_lea.vmem [#allocation14], %s666
        %p668 = pneg %p304
        %p669 = pneg %p301
        %p670 = pneg %p325
        %p671 = pneg %p322
        %p672 = pneg %p351
        %p673 = pneg %p348
        %s674 = sand.u32 %s338, 1
        %s675 = scalar_lea.sflag [#allocation5], %s674
        %s676 = sand.u32 %s338, 1
        %s677 = smul.addr %s676, 32
        %s678 = scalar_lea.vmem [#allocation15], %s677
        %p679 = scmp.lt.s32.totalorder %s42, 1
        %s680 = scalar_select %p679, %s42, 1
        %s681 = scalar_lea.vmem %s4, %s680
        %p682 = scmp.lt.s32.totalorder %s42, 1
        %s683 = scalar_select %p682, %s42, 1
        %s684 = scalar_lea.vmem %s6, %s683
        %p685 = scmp.lt.s32.totalorder %s42, 1
        %s686 = scalar_select %p685, %s42, 1
        %s687 = scalar_lea.vmem %s8, %s686
        %s688 = smul.u32 16, %s42
        %p689 = scmp.eq.s32.totalorder %s42, 0
        // Predicated region
        $region93: #{tpu_custom_call.1} parent=63 // pred_check
          %p690 = pneg %p689
        $region94: #{tpu_custom_call.1} parent=63 // pred_check_branch
          %692 = sbr.rel (%p690) target = $region96
        $region95: #{tpu_custom_call.1} parent=63 // pred_region
          %693 = vst [vmem:[#allocation2] sm:$0xff] 0.0
          %694 = vst [vmem:[#allocation2 + $0x8] sm:$0xff] 0.0
          %695 = vst [vmem:[#allocation2 + $0x10] sm:$0xff] 0.0
          %696 = vst [vmem:[#allocation2 + $0x18] sm:$0xff] 0.0
        $region96: #{tpu_custom_call.1} parent=63 // pred_fallthru
          _
        %v697 = vld [vmem:[%s547] sm:$0xff]
        %v698 = vld [vmem:[%s547 + $0x8] sm:$0xff]
        %v699 = vld [vmem:[%s547 + $0x10] sm:$0xff]
        %v700 = vld [vmem:[%s547 + $0x18] sm:$0xff]
        %v701 = vld [vmem:[%s556] sm:$0xff]
        %v702 = vld [vmem:[%s556 + $0x8] sm:$0xff]
        %v703 = vld [vmem:[%s556 + $0x10] sm:$0xff]
        %v704 = vld [vmem:[%s556 + $0x18] sm:$0xff]
        %v705 = vld [vmem:[%s565] sm:$0xff]
        %v706 = vld [vmem:[%s565 + $0x8] sm:$0xff]
        %v707 = vld [vmem:[%s565 + $0x10] sm:$0xff]
        %v708 = vld [vmem:[%s565 + $0x18] sm:$0xff]
        %v709 = vld [vmem:[%s574] sm:$0xff]
        %v710 = vld [vmem:[%s574 + $0x8] sm:$0xff]
        %v711 = vld [vmem:[%s574 + $0x10] sm:$0xff]
        %v712 = vld [vmem:[%s574 + $0x18] sm:$0xff]
        %v713 = vld [vmem:[%s574 + $0x20] sm:$0xff]
        %v714 = vld [vmem:[%s574 + $0x28] sm:$0xff]
        %v715 = vld [vmem:[%s574 + $0x30] sm:$0xff]
        %v716 = vld [vmem:[%s574 + $0x38] sm:$0xff]
        %v717 = vld [vmem:[%s574 + $0x40] sm:$0xff]
        %v718 = vld [vmem:[%s574 + $0x48] sm:$0xff]
        %v719 = vld [vmem:[%s574 + $0x50] sm:$0xff]
        %v720 = vld [vmem:[%s574 + $0x58] sm:$0xff]
        %v721 = vld [vmem:[%s574 + $0x60] sm:$0xff]
        %v722 = vld [vmem:[%s574 + $0x68] sm:$0xff]
        %v723 = vld [vmem:[%s574 + $0x70] sm:$0xff]
        %v724 = vld [vmem:[%s574 + $0x78] sm:$0xff]
        %v725 = vld [vmem:[%s574 + $0x80] sm:$0xff]
        %v726 = vld [vmem:[%s574 + $0x88] sm:$0xff]
        %v727 = vld [vmem:[%s574 + $0x90] sm:$0xff]
        %v728 = vld [vmem:[%s574 + $0x98] sm:$0xff]
        %v729 = vld [vmem:[%s574 + $0xa0] sm:$0xff]
        %v730 = vld [vmem:[%s574 + $0xa8] sm:$0xff]
        %v731 = vld [vmem:[%s574 + $0xb0] sm:$0xff]
        %v732 = vld [vmem:[%s574 + $0xb8] sm:$0xff]
        %v733 = vld [vmem:[%s574 + $0xc0] sm:$0xff]
        %v734 = vld [vmem:[%s574 + $0xc8] sm:$0xff]
        %v735 = vld [vmem:[%s574 + $0xd0] sm:$0xff]
        %v736 = vld [vmem:[%s574 + $0xd8] sm:$0xff]
        %v737 = vld [vmem:[%s574 + $0xe0] sm:$0xff]
        %v738 = vld [vmem:[%s574 + $0xe8] sm:$0xff]
        %v739 = vld [vmem:[%s574 + $0xf0] sm:$0xff]
        %v740 = vld [vmem:[%s574 + $0xf8] sm:$0xff]
        %v741 = vld [vmem:[%s681] sm:$0x1]
        %v743 = vlaneseq
        %v744 = vshrl.u32 %v743, 7
        %v745 = vsub.s32 0, %v744
        %v746 = vrot.slane %v741, %v745
        %748 = vmatprep.subr.mxu0 0.0
        %749 = vmatpush1.msra.mxu0 %v724
        %750 = vmatprep.subr.mxu0 0.0
        %751 = vmatpush1.msra.mxu0 %v723
        %752 = vmatprep.subr.mxu0 0.0
        %753 = vmatpush1.msra.mxu0 %v722
        %754 = vmatprep.subr.mxu0 0.0
        %755 = vmatpush1.msra.mxu0 %v721
        %756 = vmatprep.subr.mxu0 0.0
        %757 = vmatpush1.msra.mxu0 %v720
        %758 = vmatprep.subr.mxu0 0.0
        %759 = vmatpush1.msra.mxu0 %v719
        %760 = vmatprep.subr.mxu0 0.0
        %761 = vmatpush1.msra.mxu0 %v718
        %762 = vmatprep.subr.mxu0 0.0
        %763 = vmatpush1.msra.mxu0 %v717
        %764 = vmatprep.subr.mxu0 0.0
        %765 = vmatpush1.msra.mxu0 %v716
        %766 = vmatprep.subr.mxu0 0.0
        %767 = vmatpush1.msra.mxu0 %v715
        %768 = vmatprep.subr.mxu0 0.0
        %769 = vmatpush1.msra.mxu0 %v714
        %770 = vmatprep.subr.mxu0 0.0
        %771 = vmatpush1.msra.mxu0 %v713
        %772 = vmatprep.subr.mxu0 0.0
        %773 = vmatpush1.msra.mxu0 %v712
        %774 = vmatprep.subr.mxu0 0.0
        %775 = vmatpush1.msra.mxu0 %v711
        %776 = vmatprep.subr.mxu0 0.0
        %777 = vmatpush1.msra.mxu0 %v710
        %778 = vmatprep.subr.mxu0 0.0
        %779 = vmatpush1.msra.mxu0 %v709
        %780 = vmatprep.subr.mxu0 0.0
        %781 = vmatpush2.msra.mxu0 %v740
        %782 = vmatprep.subr.mxu0 0.0
        %783 = vmatpush2.msra.mxu0 %v739
        %784 = vmatprep.subr.mxu0 0.0
        %785 = vmatpush2.msra.mxu0 %v738
        %786 = vmatprep.subr.mxu0 0.0
        %787 = vmatpush2.msra.mxu0 %v737
        %788 = vmatprep.subr.mxu0 0.0
        %789 = vmatpush2.msra.mxu0 %v736
        %790 = vmatprep.subr.mxu0 0.0
        %791 = vmatpush2.msra.mxu0 %v735
        %792 = vmatprep.subr.mxu0 0.0
        %793 = vmatpush2.msra.mxu0 %v734
        %794 = vmatprep.subr.mxu0 0.0
        %795 = vmatpush2.msra.mxu0 %v733
        %796 = vmatprep.subr.mxu0 0.0
        %797 = vmatpush2.msra.mxu0 %v732
        %798 = vmatprep.subr.mxu0 0.0
        %799 = vmatpush2.msra.mxu0 %v731
        %800 = vmatprep.subr.mxu0 0.0
        %801 = vmatpush2.msra.mxu0 %v730
        %802 = vmatprep.subr.mxu0 0.0
        %803 = vmatpush2.msra.mxu0 %v729
        %804 = vmatprep.subr.mxu0 0.0
        %805 = vmatpush2.msra.mxu0 %v728
        %806 = vmatprep.subr.mxu0 0.0
        %807 = vmatpush2.msra.mxu0 %v727
        %808 = vmatprep.subr.mxu0 0.0
        %809 = vmatpush2.msra.mxu0 %v726
        %810 = vmatprep.subr.mxu0 0.0
        %811 = vmatpush2.msra.mxu0 %v725
        %812 = vmatprep.mubr.f32.mxu0 %v698
        %813 = vmatmul.mubr.f32.gmra.mxu0 %v697
        %v814 = vpop.f32.mrf.mxu0
        %v815 = vadd.f32 %v746, %v814
        %v816 = vpop.f32.mrf.mxu0
        %817 = vmatprep.mubr.f32.mxu0 %v700
        %818 = vmatmul.mubr.f32.gmra.mxu0 %v699
        %v819 = vpop.f32.mrf.mxu0
        %v820 = vadd.f32 %v746, %v819
        %v821 = vpop.f32.mrf.mxu0
        %822 = vdwg.mxu0
        %v823 = vld [vmem:[%s583] sm:$0xff]
        %v824 = vld [vmem:[%s583 + $0x8] sm:$0xff]
        %v825 = vld [vmem:[%s583 + $0x10] sm:$0xff]
        %v826 = vld [vmem:[%s583 + $0x18] sm:$0xff]
        %v827 = vld [vmem:[%s583 + $0x20] sm:$0xff]
        %v828 = vld [vmem:[%s583 + $0x28] sm:$0xff]
        %v829 = vld [vmem:[%s583 + $0x30] sm:$0xff]
        %v830 = vld [vmem:[%s583 + $0x38] sm:$0xff]
        %v831 = vld [vmem:[%s583 + $0x40] sm:$0xff]
        %v832 = vld [vmem:[%s583 + $0x48] sm:$0xff]
        %v833 = vld [vmem:[%s583 + $0x50] sm:$0xff]
        %v834 = vld [vmem:[%s583 + $0x58] sm:$0xff]
        %v835 = vld [vmem:[%s583 + $0x60] sm:$0xff]
        %v836 = vld [vmem:[%s583 + $0x68] sm:$0xff]
        %v837 = vld [vmem:[%s583 + $0x70] sm:$0xff]
        %v838 = vld [vmem:[%s583 + $0x78] sm:$0xff]
        %v839 = vld [vmem:[%s583 + $0x80] sm:$0xff]
        %v840 = vld [vmem:[%s583 + $0x88] sm:$0xff]
        %v841 = vld [vmem:[%s583 + $0x90] sm:$0xff]
        %v842 = vld [vmem:[%s583 + $0x98] sm:$0xff]
        %v843 = vld [vmem:[%s583 + $0xa0] sm:$0xff]
        %v844 = vld [vmem:[%s583 + $0xa8] sm:$0xff]
        %v845 = vld [vmem:[%s583 + $0xb0] sm:$0xff]
        %v846 = vld [vmem:[%s583 + $0xb8] sm:$0xff]
        %v847 = vld [vmem:[%s583 + $0xc0] sm:$0xff]
        %v848 = vld [vmem:[%s583 + $0xc8] sm:$0xff]
        %v849 = vld [vmem:[%s583 + $0xd0] sm:$0xff]
        %v850 = vld [vmem:[%s583 + $0xd8] sm:$0xff]
        %v851 = vld [vmem:[%s583 + $0xe0] sm:$0xff]
        %v852 = vld [vmem:[%s583 + $0xe8] sm:$0xff]
        %v853 = vld [vmem:[%s583 + $0xf0] sm:$0xff]
        %v854 = vld [vmem:[%s583 + $0xf8] sm:$0xff]
        %v855 = vld [vmem:[%s684] sm:$0x1]
        %v857 = vlaneseq
        %v858 = vshrl.u32 %v857, 7
        %v859 = vsub.s32 0, %v858
        %v860 = vrot.slane %v855, %v859
        %862 = vmatprep.subr.mxu0 0.0
        %863 = vmatpush1.msra.mxu0 %v838
        %864 = vmatprep.subr.mxu0 0.0
        %865 = vmatpush1.msra.mxu0 %v837
        %866 = vmatprep.subr.mxu0 0.0
        %867 = vmatpush1.msra.mxu0 %v836
        %868 = vmatprep.subr.mxu0 0.0
        %869 = vmatpush1.msra.mxu0 %v835
        %870 = vmatprep.subr.mxu0 0.0
        %871 = vmatpush1.msra.mxu0 %v834
        %872 = vmatprep.subr.mxu0 0.0
        %873 = vmatpush1.msra.mxu0 %v833
        %874 = vmatprep.subr.mxu0 0.0
        %875 = vmatpush1.msra.mxu0 %v832
        %876 = vmatprep.subr.mxu0 0.0
        %877 = vmatpush1.msra.mxu0 %v831
        %878 = vmatprep.subr.mxu0 0.0
        %879 = vmatpush1.msra.mxu0 %v830
        %880 = vmatprep.subr.mxu0 0.0
        %881 = vmatpush1.msra.mxu0 %v829
        %882 = vmatprep.subr.mxu0 0.0
        %883 = vmatpush1.msra.mxu0 %v828
        %884 = vmatprep.subr.mxu0 0.0
        %885 = vmatpush1.msra.mxu0 %v827
        %886 = vmatprep.subr.mxu0 0.0
        %887 = vmatpush1.msra.mxu0 %v826
        %888 = vmatprep.subr.mxu0 0.0
        %889 = vmatpush1.msra.mxu0 %v825
        %890 = vmatprep.subr.mxu0 0.0
        %891 = vmatpush1.msra.mxu0 %v824
        %892 = vmatprep.subr.mxu0 0.0
        %893 = vmatpush1.msra.mxu0 %v823
        %894 = vmatprep.subr.mxu0 0.0
        %895 = vmatpush2.msra.mxu0 %v854
        %896 = vmatprep.subr.mxu0 0.0
        %897 = vmatpush2.msra.mxu0 %v853
        %898 = vmatprep.subr.mxu0 0.0
        %899 = vmatpush2.msra.mxu0 %v852
        %900 = vmatprep.subr.mxu0 0.0
        %901 = vmatpush2.msra.mxu0 %v851
        %902 = vmatprep.subr.mxu0 0.0
        %903 = vmatpush2.msra.mxu0 %v850
        %904 = vmatprep.subr.mxu0 0.0
        %905 = vmatpush2.msra.mxu0 %v849
        %906 = vmatprep.subr.mxu0 0.0
        %907 = vmatpush2.msra.mxu0 %v848
        %908 = vmatprep.subr.mxu0 0.0
        %909 = vmatpush2.msra.mxu0 %v847
        %910 = vmatprep.subr.mxu0 0.0
        %911 = vmatpush2.msra.mxu0 %v846
        %912 = vmatprep.subr.mxu0 0.0
        %913 = vmatpush2.msra.mxu0 %v845
        %914 = vmatprep.subr.mxu0 0.0
        %915 = vmatpush2.msra.mxu0 %v844
        %916 = vmatprep.subr.mxu0 0.0
        %917 = vmatpush2.msra.mxu0 %v843
        %918 = vmatprep.subr.mxu0 0.0
        %919 = vmatpush2.msra.mxu0 %v842
        %920 = vmatprep.subr.mxu0 0.0
        %921 = vmatpush2.msra.mxu0 %v841
        %922 = vmatprep.subr.mxu0 0.0
        %923 = vmatpush2.msra.mxu0 %v840
        %924 = vmatprep.subr.mxu0 0.0
        %925 = vmatpush2.msra.mxu0 %v839
        %926 = vmatprep.mubr.f32.mxu0 %v702
        %927 = vmatmul.mubr.f32.gmra.mxu0 %v701
        %v928 = vpop.f32.mrf.mxu0
        %v929 = vadd.f32 %v860, %v928
        %v930 = vpop.f32.mrf.mxu0
        %931 = vmatprep.mubr.f32.mxu0 %v704
        %932 = vmatmul.mubr.f32.gmra.mxu0 %v703
        %v933 = vpop.f32.mrf.mxu0
        %v934 = vadd.f32 %v860, %v933
        %v935 = vpop.f32.mrf.mxu0
        %936 = vdwg.mxu0
        %v937 = vld [vmem:[%s592] sm:$0xff]
        %v938 = vld [vmem:[%s592 + $0x8] sm:$0xff]
        %v939 = vld [vmem:[%s592 + $0x10] sm:$0xff]
        %v940 = vld [vmem:[%s592 + $0x18] sm:$0xff]
        %v941 = vld [vmem:[%s592 + $0x20] sm:$0xff]
        %v942 = vld [vmem:[%s592 + $0x28] sm:$0xff]
        %v943 = vld [vmem:[%s592 + $0x30] sm:$0xff]
        %v944 = vld [vmem:[%s592 + $0x38] sm:$0xff]
        %v945 = vld [vmem:[%s592 + $0x40] sm:$0xff]
        %v946 = vld [vmem:[%s592 + $0x48] sm:$0xff]
        %v947 = vld [vmem:[%s592 + $0x50] sm:$0xff]
        %v948 = vld [vmem:[%s592 + $0x58] sm:$0xff]
        %v949 = vld [vmem:[%s592 + $0x60] sm:$0xff]
        %v950 = vld [vmem:[%s592 + $0x68] sm:$0xff]
        %v951 = vld [vmem:[%s592 + $0x70] sm:$0xff]
        %v952 = vld [vmem:[%s592 + $0x78] sm:$0xff]
        %v953 = vld [vmem:[%s592 + $0x80] sm:$0xff]
        %v954 = vld [vmem:[%s592 + $0x88] sm:$0xff]
        %v955 = vld [vmem:[%s592 + $0x90] sm:$0xff]
        %v956 = vld [vmem:[%s592 + $0x98] sm:$0xff]
        %v957 = vld [vmem:[%s592 + $0xa0] sm:$0xff]
        %v958 = vld [vmem:[%s592 + $0xa8] sm:$0xff]
        %v959 = vld [vmem:[%s592 + $0xb0] sm:$0xff]
        %v960 = vld [vmem:[%s592 + $0xb8] sm:$0xff]
        %v961 = vld [vmem:[%s592 + $0xc0] sm:$0xff]
        %v962 = vld [vmem:[%s592 + $0xc8] sm:$0xff]
        %v963 = vld [vmem:[%s592 + $0xd0] sm:$0xff]
        %v964 = vld [vmem:[%s592 + $0xd8] sm:$0xff]
        %v965 = vld [vmem:[%s592 + $0xe0] sm:$0xff]
        %v966 = vld [vmem:[%s592 + $0xe8] sm:$0xff]
        %v967 = vld [vmem:[%s592 + $0xf0] sm:$0xff]
        %v968 = vld [vmem:[%s592 + $0xf8] sm:$0xff]
        %v969 = vld [vmem:[%s687] sm:$0x1]
        %v971 = vlaneseq
        %v972 = vshrl.u32 %v971, 7
        %v973 = vsub.s32 0, %v972
        %v974 = vrot.slane %v969, %v973
        %976 = vmatprep.subr.mxu0 0.0
        %977 = vmatpush1.msra.mxu0 %v952
        %978 = vmatprep.subr.mxu0 0.0
        %979 = vmatpush1.msra.mxu0 %v951
        %980 = vmatprep.subr.mxu0 0.0
        %981 = vmatpush1.msra.mxu0 %v950
        %982 = vmatprep.subr.mxu0 0.0
        %983 = vmatpush1.msra.mxu0 %v949
        %984 = vmatprep.subr.mxu0 0.0
        %985 = vmatpush1.msra.mxu0 %v948
        %986 = vmatprep.subr.mxu0 0.0
        %987 = vmatpush1.msra.mxu0 %v947
        %988 = vmatprep.subr.mxu0 0.0
        %989 = vmatpush1.msra.mxu0 %v946
        %990 = vmatprep.subr.mxu0 0.0
        %991 = vmatpush1.msra.mxu0 %v945
        %992 = vmatprep.subr.mxu0 0.0
        %993 = vmatpush1.msra.mxu0 %v944
        %994 = vmatprep.subr.mxu0 0.0
        %995 = vmatpush1.msra.mxu0 %v943
        %996 = vmatprep.subr.mxu0 0.0
        %997 = vmatpush1.msra.mxu0 %v942
        %998 = vmatprep.subr.mxu0 0.0
        %999 = vmatpush1.msra.mxu0 %v941
        %1000 = vmatprep.subr.mxu0 0.0
        %1001 = vmatpush1.msra.mxu0 %v940
        %1002 = vmatprep.subr.mxu0 0.0
        %1003 = vmatpush1.msra.mxu0 %v939
        %1004 = vmatprep.subr.mxu0 0.0
        %1005 = vmatpush1.msra.mxu0 %v938
        %1006 = vmatprep.subr.mxu0 0.0
        %1007 = vmatpush1.msra.mxu0 %v937
        %1008 = vmatprep.subr.mxu0 0.0
        %1009 = vmatpush2.msra.mxu0 %v968
        %1010 = vmatprep.subr.mxu0 0.0
        %1011 = vmatpush2.msra.mxu0 %v967
        %1012 = vmatprep.subr.mxu0 0.0
        %1013 = vmatpush2.msra.mxu0 %v966
        %1014 = vmatprep.subr.mxu0 0.0
        %1015 = vmatpush2.msra.mxu0 %v965
        %1016 = vmatprep.subr.mxu0 0.0
        %1017 = vmatpush2.msra.mxu0 %v964
        %1018 = vmatprep.subr.mxu0 0.0
        %1019 = vmatpush2.msra.mxu0 %v963
        %1020 = vmatprep.subr.mxu0 0.0
        %1021 = vmatpush2.msra.mxu0 %v962
        %1022 = vmatprep.subr.mxu0 0.0
        %1023 = vmatpush2.msra.mxu0 %v961
        %1024 = vmatprep.subr.mxu0 0.0
        %1025 = vmatpush2.msra.mxu0 %v960
        %1026 = vmatprep.subr.mxu0 0.0
        %1027 = vmatpush2.msra.mxu0 %v959
        %1028 = vmatprep.subr.mxu0 0.0
        %1029 = vmatpush2.msra.mxu0 %v958
        %1030 = vmatprep.subr.mxu0 0.0
        %1031 = vmatpush2.msra.mxu0 %v957
        %1032 = vmatprep.subr.mxu0 0.0
        %1033 = vmatpush2.msra.mxu0 %v956
        %1034 = vmatprep.subr.mxu0 0.0
        %1035 = vmatpush2.msra.mxu0 %v955
        %1036 = vmatprep.subr.mxu0 0.0
        %1037 = vmatpush2.msra.mxu0 %v954
        %1038 = vmatprep.subr.mxu0 0.0
        %1039 = vmatpush2.msra.mxu0 %v953
        %1040 = vmatprep.mubr.f32.mxu0 %v706
        %1041 = vmatmul.mubr.f32.gmra.mxu0 %v705
        %v1042 = vpop.f32.mrf.mxu0
        %v1043 = vadd.f32 %v974, %v1042
        %v1044 = vpop.f32.mrf.mxu0
        %1045 = vmatprep.mubr.f32.mxu0 %v708
        %1046 = vmatmul.mubr.f32.gmra.mxu0 %v707
        %v1047 = vpop.f32.mrf.mxu0
        %v1048 = vadd.f32 %v974, %v1047
        %v1049 = vpop.f32.mrf.mxu0
        %1050 = vdwg.mxu0
        %v1051 = vmul.f32 %v815, 0.088388346
        %v1052 = vmul.f32 %v820, 0.088388346
        %1053 = vmatprep.subr.mxu0 0.0
        %1054 = vmatpush1.xpose.msra.mxu0 0.0
        %1055 = vmatprep.subr.mxu0 0.0
        %1056 = vmatpush1.xpose.msra.mxu0 0.0
        %1057 = vmatprep.subr.mxu0 0.0
        %1058 = vmatpush1.xpose.msra.mxu0 0.0
        %1059 = vmatprep.subr.mxu0 0.0
        %1060 = vmatpush1.xpose.msra.mxu0 0.0
        %1061 = vmatprep.subr.mxu0 0.0
        %1062 = vmatpush1.xpose.msra.mxu0 0.0
        %1063 = vmatprep.subr.mxu0 0.0
        %1064 = vmatpush1.xpose.msra.mxu0 0.0
        %1065 = vmatprep.subr.mxu0 0.0
        %1066 = vmatpush1.xpose.msra.mxu0 0.0
        %1067 = vmatprep.subr.mxu0 0.0
        %1068 = vmatpush1.xpose.msra.mxu0 0.0
        %1069 = vmatprep.subr.mxu0 0.0
        %1070 = vmatpush1.xpose.msra.mxu0 0.0
        %1071 = vmatprep.subr.mxu0 0.0
        %1072 = vmatpush1.xpose.msra.mxu0 0.0
        %1073 = vmatprep.subr.mxu0 0.0
        %1074 = vmatpush1.xpose.msra.mxu0 0.0
        %1075 = vmatprep.subr.mxu0 0.0
        %1076 = vmatpush1.xpose.msra.mxu0 0.0
        %1077 = vmatprep.subr.mxu0 0.0
        %1078 = vmatpush1.xpose.msra.mxu0 0.0
        %1079 = vmatprep.subr.mxu0 0.0
        %1080 = vmatpush1.xpose.msra.mxu0 0.0
        %1081 = vmatprep.subr.mxu0 0.0
        %1082 = vmatpush1.xpose.msra.mxu0 %v934
        %1083 = vmatprep.subr.mxu0 0.0
        %1084 = vmatpush1.xpose.msra.mxu0 %v929
        %1085 = vmatprep.subr.mxu0 0.0
        %1086 = vmatpush2.xpose.msra.mxu0 0.0
        %1087 = vmatprep.subr.mxu0 0.0
        %1088 = vmatpush2.xpose.msra.mxu0 0.0
        %1089 = vmatprep.subr.mxu0 0.0
        %1090 = vmatpush2.xpose.msra.mxu0 0.0
        %1091 = vmatprep.subr.mxu0 0.0
        %1092 = vmatpush2.xpose.msra.mxu0 0.0
        %1093 = vmatprep.subr.mxu0 0.0
        %1094 = vmatpush2.xpose.msra.mxu0 0.0
        %1095 = vmatprep.subr.mxu0 0.0
        %1096 = vmatpush2.xpose.msra.mxu0 0.0
        %1097 = vmatprep.subr.mxu0 0.0
        %1098 = vmatpush2.xpose.msra.mxu0 0.0
        %1099 = vmatprep.subr.mxu0 0.0
        %1100 = vmatpush2.xpose.msra.mxu0 0.0
        %1101 = vmatprep.subr.mxu0 0.0
        %1102 = vmatpush2.xpose.msra.mxu0 0.0
        %1103 = vmatprep.subr.mxu0 0.0
        %1104 = vmatpush2.xpose.msra.mxu0 0.0
        %1105 = vmatprep.subr.mxu0 0.0
        %1106 = vmatpush2.xpose.msra.mxu0 0.0
        %1107 = vmatprep.subr.mxu0 0.0
        %1108 = vmatpush2.xpose.msra.mxu0 0.0
        %1109 = vmatprep.subr.mxu0 0.0
        %1110 = vmatpush2.xpose.msra.mxu0 0.0
        %1111 = vmatprep.subr.mxu0 0.0
        %1112 = vmatpush2.xpose.msra.mxu0 0.0
        %1113 = vmatprep.subr.mxu0 0.0
        %1114 = vmatpush2.xpose.msra.mxu0 0.0
        %1115 = vmatprep.subr.mxu0 0.0
        %1116 = vmatpush2.xpose.msra.mxu0 0.0
        %1117 = vmatprep.mubr.f32.mxu0 0.0
        %1118 = vmatmul.mubr.f32.gmra.mxu0 %v1051
        %v1119 = vpop.f32.mrf.mxu0
        %v1120 = vadd.f32 0.0, %v1119
        %v1121 = vpop.f32.mrf.mxu0
        %1122 = vmatprep.mubr.f32.mxu0 0.0
        %1123 = vmatmul.mubr.f32.gmra.mxu0 %v1052
        %v1124 = vpop.f32.mrf.mxu0
        %v1125 = vadd.f32 0.0, %v1124
        %v1126 = vpop.f32.mrf.mxu0
        %1127 = vdwg.mxu0
        %vm1128 = vcmask 130048
        %v1129 = vsel %vm1128, %v1120, -inf
        %1130 = vmax.xlane.f32.xlu0 %v1129
        %v1131 = vpop.xlane.xlu0 %1130
        %v1132 = vsel %vm1128, %v1125, -inf
        %1133 = vmax.xlane.f32.xlu0 %v1132
        %v1134 = vpop.xlane.xlu0 %1133
        %v1135 = vsub.f32 %v1120, %v1131
        %v1136 = vsub.f32 %v1125, %v1134
        %v1137 = vmul.f32 %v1135, 1.442695
        %v1138 = vpow.pop %v1137
        %v1139 = vmul.f32 %v1136, 1.442695
        %v1140 = vpow.pop %v1139
        %v1141 = vsel %vm1128, %v1138, 0.0
        %1142 = vadd.xlane.f32.xlu0 %v1141
        %v1143 = vpop.xlane.xlu0 %1142
        %v1144 = vsel %vm1128, %v1140, 0.0
        %1145 = vadd.xlane.f32.xlu0 %v1144
        %v1146 = vpop.xlane.xlu0 %1145
        %v1147 = vrcp.pop %v1143
        %v1148 = vrcp.pop %v1146
        %v1149 = vmul.f32 %v1138, %v1147
        %v1150 = vmul.f32 %v1140, %v1148
        %v1152 = vsel %vm1128, %v1149, 0
        %v1155 = vsel %vm1128, %v1150, 0
        %1157 = vmatprep.subr.mxu0 0.0
        %1158 = vmatpush1.msra.mxu0 0.0
        %1159 = vmatprep.subr.mxu0 0.0
        %1160 = vmatpush1.msra.mxu0 0.0
        %1161 = vmatprep.subr.mxu0 0.0
        %1162 = vmatpush1.msra.mxu0 0.0
        %1163 = vmatprep.subr.mxu0 0.0
        %1164 = vmatpush1.msra.mxu0 0.0
        %1165 = vmatprep.subr.mxu0 0.0
        %1166 = vmatpush1.msra.mxu0 0.0
        %1167 = vmatprep.subr.mxu0 0.0
        %1168 = vmatpush1.msra.mxu0 0.0
        %1169 = vmatprep.subr.mxu0 0.0
        %1170 = vmatpush1.msra.mxu0 0.0
        %1171 = vmatprep.subr.mxu0 0.0
        %1172 = vmatpush1.msra.mxu0 0.0
        %1173 = vmatprep.subr.mxu0 0.0
        %1174 = vmatpush1.msra.mxu0 0.0
        %1175 = vmatprep.subr.mxu0 0.0
        %1176 = vmatpush1.msra.mxu0 0.0
        %1177 = vmatprep.subr.mxu0 0.0
        %1178 = vmatpush1.msra.mxu0 0.0
        %1179 = vmatprep.subr.mxu0 0.0
        %1180 = vmatpush1.msra.mxu0 0.0
        %1181 = vmatprep.subr.mxu0 0.0
        %1182 = vmatpush1.msra.mxu0 0.0
        %1183 = vmatprep.subr.mxu0 0.0
        %1184 = vmatpush1.msra.mxu0 0.0
        %1185 = vmatprep.subr.mxu0 0.0
        %1186 = vmatpush1.msra.mxu0 %v1048
        %1187 = vmatprep.subr.mxu0 0.0
        %1188 = vmatpush1.msra.mxu0 %v1043
        %1189 = vmatprep.subr.mxu0 0.0
        %1190 = vmatpush2.msra.mxu0 0.0
        %1191 = vmatprep.subr.mxu0 0.0
        %1192 = vmatpush2.msra.mxu0 0.0
        %1193 = vmatprep.subr.mxu0 0.0
        %1194 = vmatpush2.msra.mxu0 0.0
        %1195 = vmatprep.subr.mxu0 0.0
        %1196 = vmatpush2.msra.mxu0 0.0
        %1197 = vmatprep.subr.mxu0 0.0
        %1198 = vmatpush2.msra.mxu0 0.0
        %1199 = vmatprep.subr.mxu0 0.0
        %1200 = vmatpush2.msra.mxu0 0.0
        %1201 = vmatprep.subr.mxu0 0.0
        %1202 = vmatpush2.msra.mxu0 0.0
        %1203 = vmatprep.subr.mxu0 0.0
        %1204 = vmatpush2.msra.mxu0 0.0
        %1205 = vmatprep.subr.mxu0 0.0
        %1206 = vmatpush2.msra.mxu0 0.0
        %1207 = vmatprep.subr.mxu0 0.0
        %1208 = vmatpush2.msra.mxu0 0.0
        %1209 = vmatprep.subr.mxu0 0.0
        %1210 = vmatpush2.msra.mxu0 0.0
        %1211 = vmatprep.subr.mxu0 0.0
        %1212 = vmatpush2.msra.mxu0 0.0
        %1213 = vmatprep.subr.mxu0 0.0
        %1214 = vmatpush2.msra.mxu0 0.0
        %1215 = vmatprep.subr.mxu0 0.0
        %1216 = vmatpush2.msra.mxu0 0.0
        %1217 = vmatprep.subr.mxu0 0.0
        %1218 = vmatpush2.msra.mxu0 0.0
        %1219 = vmatprep.subr.mxu0 0.0
        %1220 = vmatpush2.msra.mxu0 0.0
        %1221 = vmatprep.mubr.f32.mxu0 0.0
        %1222 = vmatmul.mubr.f32.gmra.mxu0 %v1152
        %v1223 = vpop.f32.mrf.mxu0
        %v1224 = vadd.f32 0.0, %v1223
        %v1225 = vpop.f32.mrf.mxu0
        %1226 = vmatprep.mubr.f32.mxu0 0.0
        %1227 = vmatmul.mubr.f32.gmra.mxu0 %v1155
        %v1228 = vpop.f32.mrf.mxu0
        %v1229 = vadd.f32 0.0, %v1228
        %v1230 = vpop.f32.mrf.mxu0
        %1231 = vdwg.mxu0
        %v1232 = vld [vmem:[#allocation2] sm:$0xff]
        %v1233 = vld [vmem:[#allocation2 + $0x8] sm:$0xff]
        %v1234 = vld [vmem:[#allocation2 + $0x10] sm:$0xff]
        %v1235 = vld [vmem:[#allocation2 + $0x18] sm:$0xff]
        %v1236 = vld [vmem:[%s601] sm:$0xff]
        %v1237 = vld [vmem:[%s601 + $0x8] sm:$0xff]
        %v1238 = vld [vmem:[%s601 + $0x10] sm:$0xff]
        %v1239 = vld [vmem:[%s601 + $0x18] sm:$0xff]
        %v1240 = vld [vmem:[%s601 + $0x20] sm:$0xff]
        %v1241 = vld [vmem:[%s601 + $0x28] sm:$0xff]
        %v1242 = vld [vmem:[%s601 + $0x30] sm:$0xff]
        %v1243 = vld [vmem:[%s601 + $0x38] sm:$0xff]
        %v1244 = vld [vmem:[%s601 + $0x40] sm:$0xff]
        %v1245 = vld [vmem:[%s601 + $0x48] sm:$0xff]
        %v1246 = vld [vmem:[%s601 + $0x50] sm:$0xff]
        %v1247 = vld [vmem:[%s601 + $0x58] sm:$0xff]
        %v1248 = vld [vmem:[%s601 + $0x60] sm:$0xff]
        %v1249 = vld [vmem:[%s601 + $0x68] sm:$0xff]
        %v1250 = vld [vmem:[%s601 + $0x70] sm:$0xff]
        %v1251 = vld [vmem:[%s601 + $0x78] sm:$0xff]
        %v1252 = vld [vmem:[%s601 + $0x80] sm:$0xff]
        %v1253 = vld [vmem:[%s601 + $0x88] sm:$0xff]
        %v1254 = vld [vmem:[%s601 + $0x90] sm:$0xff]
        %v1255 = vld [vmem:[%s601 + $0x98] sm:$0xff]
        %v1256 = vld [vmem:[%s601 + $0xa0] sm:$0xff]
        %v1257 = vld [vmem:[%s601 + $0xa8] sm:$0xff]
        %v1258 = vld [vmem:[%s601 + $0xb0] sm:$0xff]
        %v1259 = vld [vmem:[%s601 + $0xb8] sm:$0xff]
        %v1260 = vld [vmem:[%s601 + $0xc0] sm:$0xff]
        %v1261 = vld [vmem:[%s601 + $0xc8] sm:$0xff]
        %v1262 = vld [vmem:[%s601 + $0xd0] sm:$0xff]
        %v1263 = vld [vmem:[%s601 + $0xd8] sm:$0xff]
        %v1264 = vld [vmem:[%s601 + $0xe0] sm:$0xff]
        %v1265 = vld [vmem:[%s601 + $0xe8] sm:$0xff]
        %v1266 = vld [vmem:[%s601 + $0xf0] sm:$0xff]
        %v1267 = vld [vmem:[%s601 + $0xf8] sm:$0xff]
        %1268 = vmatprep.subr.mxu0 %v1267
        %1269 = vmatpush1.msra.mxu0 %v1266
        %1270 = vmatprep.subr.mxu0 %v1265
        %1271 = vmatpush1.msra.mxu0 %v1264
        %1272 = vmatprep.subr.mxu0 %v1263
        %1273 = vmatpush1.msra.mxu0 %v1262
        %1274 = vmatprep.subr.mxu0 %v1261
        %1275 = vmatpush1.msra.mxu0 %v1260
        %1276 = vmatprep.subr.mxu0 %v1259
        %1277 = vmatpush1.msra.mxu0 %v1258
        %1278 = vmatprep.subr.mxu0 %v1257
        %1279 = vmatpush1.msra.mxu0 %v1256
        %1280 = vmatprep.subr.mxu0 %v1255
        %1281 = vmatpush1.msra.mxu0 %v1254
        %1282 = vmatprep.subr.mxu0 %v1253
        %1283 = vmatpush1.msra.mxu0 %v1252
        %1284 = vmatprep.subr.mxu0 %v1251
        %1285 = vmatpush1.msra.mxu0 %v1250
        %1286 = vmatprep.subr.mxu0 %v1249
        %1287 = vmatpush1.msra.mxu0 %v1248
        %1288 = vmatprep.subr.mxu0 %v1247
        %1289 = vmatpush1.msra.mxu0 %v1246
        %1290 = vmatprep.subr.mxu0 %v1245
        %1291 = vmatpush1.msra.mxu0 %v1244
        %1292 = vmatprep.subr.mxu0 %v1243
        %1293 = vmatpush1.msra.mxu0 %v1242
        %1294 = vmatprep.subr.mxu0 %v1241
        %1295 = vmatpush1.msra.mxu0 %v1240
        %1296 = vmatprep.subr.mxu0 %v1239
        %1297 = vmatpush1.msra.mxu0 %v1238
        %1298 = vmatprep.subr.mxu0 %v1237
        %1299 = vmatpush1.msra.mxu0 %v1236
        %1300 = vmatprep.subr.mxu0 0.0
        %1301 = vmatpush2.msra.mxu0 0.0
        %1302 = vmatprep.subr.mxu0 0.0
        %1303 = vmatpush2.msra.mxu0 0.0
        %1304 = vmatprep.subr.mxu0 0.0
        %1305 = vmatpush2.msra.mxu0 0.0
        %1306 = vmatprep.subr.mxu0 0.0
        %1307 = vmatpush2.msra.mxu0 0.0
        %1308 = vmatprep.subr.mxu0 0.0
        %1309 = vmatpush2.msra.mxu0 0.0
        %1310 = vmatprep.subr.mxu0 0.0
        %1311 = vmatpush2.msra.mxu0 0.0
        %1312 = vmatprep.subr.mxu0 0.0
        %1313 = vmatpush2.msra.mxu0 0.0
        %1314 = vmatprep.subr.mxu0 0.0
        %1315 = vmatpush2.msra.mxu0 0.0
        %1316 = vmatprep.subr.mxu0 0.0
        %1317 = vmatpush2.msra.mxu0 0.0
        %1318 = vmatprep.subr.mxu0 0.0
        %1319 = vmatpush2.msra.mxu0 0.0
        %1320 = vmatprep.subr.mxu0 0.0
        %1321 = vmatpush2.msra.mxu0 0.0
        %1322 = vmatprep.subr.mxu0 0.0
        %1323 = vmatpush2.msra.mxu0 0.0
        %1324 = vmatprep.subr.mxu0 0.0
        %1325 = vmatpush2.msra.mxu0 0.0
        %1326 = vmatprep.subr.mxu0 0.0
        %1327 = vmatpush2.msra.mxu0 0.0
        %1328 = vmatprep.subr.mxu0 0.0
        %1329 = vmatpush2.msra.mxu0 0.0
        %1330 = vmatprep.subr.mxu0 0.0
        %1331 = vmatpush2.msra.mxu0 0.0
        %1332 = vmatprep.mubr.f32.mxu0 0.0
        %1333 = vmatmul.mubr.f32.gmra.mxu0 %v1224
        %v1334 = vpop.f32.mrf.mxu0
        %v1335 = vadd.f32 0.0, %v1334
        %v1336 = vpop.f32.mrf.mxu0
        %v1337 = vadd.f32 0.0, %v1336
        %1338 = vmatprep.mubr.f32.mxu0 0.0
        %1339 = vmatmul.mubr.f32.gmra.mxu0 %v1229
        %v1340 = vpop.f32.mrf.mxu0
        %v1341 = vadd.f32 0.0, %v1340
        %v1342 = vpop.f32.mrf.mxu0
        %v1343 = vadd.f32 0.0, %v1342
        %1344 = vdwg.mxu0
        %v1345 = vadd.f32 %v1232, %v1335
        %v1346 = vadd.f32 %v1233, %v1337
        %v1347 = vadd.f32 %v1234, %v1341
        %v1348 = vadd.f32 %v1235, %v1343
        %1349 = vst [vmem:[#allocation2] sm:$0xff] %v1345
        %1350 = vst [vmem:[#allocation2 + $0x8] sm:$0xff] %v1346
        %1351 = vst [vmem:[#allocation2 + $0x10] sm:$0xff] %v1347
        %1352 = vst [vmem:[#allocation2 + $0x18] sm:$0xff] %v1348
        %p1353 = scmp.eq.s32.totalorder %s42, 1
        // Predicated region
        $region97: #{tpu_custom_call.1} parent=63 // pred_check
          %p1354 = pneg %p1353
        $region98: #{tpu_custom_call.1} parent=63 // pred_check_branch
          %1356 = sbr.rel (%p1354) target = $region100
        $region99: #{tpu_custom_call.1} parent=63 // pred_region
          %v1357 = vld [vmem:[#allocation2] sm:$0xff]
          %v1358 = vld [vmem:[#allocation2 + $0x8] sm:$0xff]
          %v1359 = vld [vmem:[#allocation2 + $0x10] sm:$0xff]
          %v1360 = vld [vmem:[#allocation2 + $0x18] sm:$0xff]
          %v1361 = vld [vmem:[%s10] sm:$0x3]
          %v1363 = vlaneseq
          %v1364 = vshrl.u32 %v1363, 7
          %v1365 = vsub.s32 0, %v1364
          %v1366 = vrot.slane %v1361, %v1365
          %v1367 = vlaneseq
          %v1368 = vshrl.u32 %v1367, 7
          %v1369 = vsub.s32 1, %v1368
          %v1370 = vrot.slane %v1361, %v1369
          %v1373 = vadd.f32 %v1357, %v1366
          %v1374 = vadd.f32 %v1358, %v1370
          %v1375 = vadd.f32 %v1359, %v1366
          %v1376 = vadd.f32 %v1360, %v1370
          %1377 = vst [vmem:[%s678] sm:$0xff] %v1373
          %1378 = vst [vmem:[%s678 + $0x8] sm:$0xff] %v1374
          %1379 = vst [vmem:[%s678 + $0x10] sm:$0xff] %v1375
          %1380 = vst [vmem:[%s678 + $0x18] sm:$0xff] %v1376
        $region100: #{tpu_custom_call.1} parent=63 // pred_fallthru
          _
        %s1381 = sand.u32 %s338, 1
        %s1382 = scalar_lea.sflag [#allocation5], %s1381
        %s1383 = sand.u32 %s338, 1
        %s1384 = smul.addr %s1383, 32
        %s1385 = scalar_lea.vmem [#allocation15], %s1384
        // Predicated region
        $region101: #{tpu_custom_call.1} parent=63 // pred_check
          %p1386 = pneg %p348
        $region102: #{tpu_custom_call.1} parent=63 // pred_check_branch
          %1388 = sbr.rel (%p1386) target = $region104
        $region103: #{tpu_custom_call.1} parent=63 // pred_region
          %s1390 = ssub.s32 512, 512
          %1391 = vsyncadd %s1382, %s1390
          %s1392 = smul.addr %s41, 4
          %s1393 = smul.addr %s1392, 128
          %s1394 = scalar_lea.hbm %s11, %s1393
          %s1395 = sshll.u32 %s1385, 4
          %s1396 = int_to_ptr.vmem [resolvable:$true] %s1395
          %1401 = dma.vmem_to_hbm [thread:$0]  %s1396, 512, %s1394, %s1382, 256, 256, 16
        $region104: #{tpu_custom_call.1} parent=63 // pred_fallthru
          _
      $region64: #{tpu_custom_call.1} parent=5 // pred_fallthru
        _
      %p1402 = scmp.le.s32.totalorder 2, %s32
      // Predicated region
      $region105: #{tpu_custom_call.1} parent=5 // pred_check
        %p1403 = pneg %p1402
      $region106: #{tpu_custom_call.1} parent=5 // pred_check_branch
        %1405 = sbr.rel (%p1403) target = $region108
      $region107: #{tpu_custom_call.1} parent=5 // pred_region
        %s1406 = ssub.s32 %s32, 2
        // Predicated region
        $region109: #{tpu_custom_call.1} parent=107 // pred_check
          %p1407 = pneg %p354
        $region110: #{tpu_custom_call.1} parent=107 // pred_check_branch
          %1409 = sbr.rel (%p1407) target = $region112
        $region111: #{tpu_custom_call.1} parent=107 // pred_region
          %s1410 = sand.u32 %s339, 1
          %s1411 = scalar_lea.sflag [#allocation5], %s1410
          %s1412 = sand.u32 %s339, 1
          %s1413 = smul.addr %s1412, 32
          %s1414 = scalar_lea.vmem [#allocation15], %s1413
          %1415 = dma.done %s1411, 512
        $region112: #{tpu_custom_call.1} parent=107 // pred_fallthru
          _
      $region108: #{tpu_custom_call.1} parent=5 // pred_fallthru
        _
    $region6: #{tpu_custom_call.1} parent=1 // loop_footer
      %s36 = sadd.s32 1, %s32
    $region7: #{tpu_custom_call.1} parent=1 // loop_footer_branch
      %31 = sbr.rel target = $region3
    $region8: #{tpu_custom_call.1} parent=1 // loop_exit
      _
    %1416 = vsyncpa [#allocation4], 1
    %s1417 = scalar_lea.sflag [#allocation4], 1
    %1418 = vsyncpa %s1417, 1
    %1419 = vsyncpa [#allocation7], 1
    %s1420 = scalar_lea.sflag [#allocation7], 1
    %1421 = vsyncpa %s1420, 1
    %1422 = vsyncpa [#allocation10], 1
    %s1423 = scalar_lea.sflag [#allocation10], 1
    %1424 = vsyncpa %s1423, 1
    %1425 = vsyncpa [#allocation13], 1
    %s1426 = scalar_lea.sflag [#allocation13], 1
    %1427 = vsyncpa %s1426, 1
    %1428 = vsyncpa [#allocation5], 1
    %s1429 = scalar_lea.sflag [#allocation5], 1
    %1430 = vsyncpa %s1429, 1

</llo_original>
